<compile_context>
chip_gen: v6e
topology: v6e:2x2x1
jax: 0.10.0
libtpu: 0.0.40
codegen_flags: <defaults>
</compile_context>

<pallas_src>
import jax
import jax.numpy as jnp
from jax import lax
from jax.experimental import pallas as pl
from jax.experimental.pallas import tpu as pltpu

EPS = 1e-5
PAD = 2          # zero pad wide enough for the 5x5 conv; 1x1/3x3 slice inside it
NEG = -1e30      # finite "-inf" for the 3x3 max-pool border (never reaches the MXU)


# ------------------------------- kernel ------------------------------------ #

def make_fused_inception_kernel(NB, H, W, Cin, Ctot):
    """Processes NB images per grid step.
       x_ref  : (NB, H+4, (W+4)*Cin) f32  zero-padded, lane-dense input slab
       wc_ref : (5, (W+4)*Cin, W*Ctot) bf16  banded conv weights, one per kernel row
       wp_ref : (W*Cin, W*Ctot)        bf16  block-diagonal pool-proj weights
       a1_ref : (2, W*Ctot)  f32  [branch BN scale; branch BN bias], tiled over w
       a2_ref : (2, Wo*Ctot) f32  [final BN scale;  final BN bias],  tiled over wo
       o_ref  : (NB*Ho, Wo*Ctot) f32  rows = nb*Ho + ho, lanes = wo*Ctot + co
    """
    Hp = H + 2 * PAD
    WpC = (W + 2 * PAD) * Cin
    WC = W * Cin
    WCo = W * Ctot
    Ho, Wo = H // 2, W // 2

    def kernel(x_ref, wc_ref, wp_ref, a1_ref, a2_ref, o_ref):
        xp = x_ref[...]                                   # (NB, Hp, WpC) f32

        # ---- merged 1x1/3x3/5x5 conv: 5 row-shifted slabs x banded weights ----
        acc = None
        for dhi in range(5):
            slab = (xp[:, dhi:dhi + H, :]
                    .reshape(NB * H, WpC)
                    .astype(jnp.bfloat16))                # cast right before the dot
            part = jnp.dot(slab, wc_ref[dhi],
                           preferred_element_type=jnp.float32)     # (NB*H, WCo)
            acc = part if acc is None else acc + part

        # ---- branch 4: 3x3 stride-1 max pool, -inf edges via one border mask ----
        row = lax.broadcasted_iota(jnp.int32, (NB, Hp, WpC), 1)
        lane = lax.broadcasted_iota(jnp.int32, (NB, Hp, WpC), 2)
        border = ((row == PAD - 1) | (row == PAD + H) |
                  ((lane >= (PAD - 1) * Cin) & (lane < PAD * Cin)) |
                  ((lane >= (PAD + W) * Cin) & (lane < (PAD + W + 1) * Cin)))
        xneg = jnp.where(border, NEG, xp)                 # only the ring at distance 1
        pooled = None
        for dh in range(3):
            for dw in range(3):
                t = xneg[:, dh + 1:dh + 1 + H,
                         (dw + 1) * Cin:(dw + 1) * Cin + WC]       # (NB, H, WC)
                pooled = t if pooled is None else jnp.maximum(pooled, t)
        acc = acc + jnp.dot(pooled.reshape(NB * H, WC).astype(jnp.bfloat16),
                            wp_ref[...], preferred_element_type=jnp.float32)

        # ---- folded per-branch eval-mode BN + ReLU ----
        a1 = a1_ref[...]
        y = jnp.maximum(acc * a1[0:1, :] + a1[1:2, :], 0.0)        # (NB*H, WCo)

        # ---- 2x2 stride-2 max pool ----
        # H direction: pair adjacent rows.
        y4 = y.reshape(NB * Ho, 2, WCo)
        r = jnp.maximum(y4[:, 0, :], y4[:, 1, :])                  # (NB*Ho, WCo)
        # W direction: max adjacent Ctot-wide lane blocks, compact to Wo*Ctot lanes.
        blocks = [jnp.maximum(r[:, (2 * wo) * Ctot:(2 * wo + 1) * Ctot],
                              r[:, (2 * wo + 1) * Ctot:(2 * wo + 2) * Ctot])
                  for wo in range(Wo)]
        p = jnp.concatenate(blocks, axis=1)                        # (NB*Ho, Wo*Ctot)

        # ---- final eval-mode BN, lane-dense store ----
        a2 = a2_ref[...]
        o_ref[...] = p * a2[0:1, :] + a2[1:2, :]

    return kernel


# --------------------------- parameter folding ------------------------------ #

def _merged_conv_kernel(params, Cin, a, b, c, Ctot):
    """(5,5,Cin,Ctot) kernel holding the 1x1/3x3/5x5 branches in their channel slots."""
    w1 = params['b1']['w']                                   # (1,1,Cin,a)
    w2 = params['b2']['w']                                   # (3,3,Cin,b)
    w3 = params['b3']['w']                                   # (5,5,Cin,c)
    conv = jnp.zeros((5, 5, Cin, Ctot), jnp.float32)
    conv = conv.at[2, 2, :, 0:a].set(w1[0, 0])               # 1x1 -> center tap
    conv = conv.at[1:4, 1:4, :, a:a + b].set(w2)             # 3x3 -> inner taps
    conv = conv.at[:, :, :, a + b:a + b + c].set(w3)         # 5x5 -> all taps
    return conv


def _banded_conv_weights(conv, W, Wp, Cin, Ctot):
    """(5, Wp*Cin, W*Ctot): for each kernel row dhi, a banded matrix mapping the
       padded-width slab (lane = padded_col*Cin + cin) to every output column
       (lane = w*Ctot + cout).  eye(Wp, W, k=-dwi)[s, w] == (s == w + dwi)."""
    mats = []
    for dhi in range(5):
        m = jnp.zeros((Wp * Cin, W * Ctot), jnp.float32)
        for dwi in range(5):
            m = m + jnp.kron(jnp.eye(Wp, W, k=-dwi, dtype=jnp.float32),
                             conv[dhi, dwi])
        mats.append(m)
    return jnp.stack(mats, axis=0)


def _pool_proj_weights(params, W, Cin, a, b, c, Ctot):
    """(W*Cin, W*Ctot) block-diagonal weight for the pool-projection 1x1 conv."""
    w4 = params['b4']['w'][0, 0]                              # (Cin, pp)
    pm = jnp.zeros((Cin, Ctot), jnp.float32).at[:, a + b + c:].set(w4)
    return jnp.kron(jnp.eye(W, dtype=jnp.float32), pm)


def _folded_affines(params, W, Wo, Ctot):
    """Branch BN (with conv bias folded) and final BN as lane-tiled scale/bias rows."""
    def fold(p):
        s = p['gamma'] * lax.rsqrt(p['var'] + EPS)
        return s, p['beta'] + (p['conv_b'] - p['mean']) * s
    ss, bs = zip(*(fold(params[k]) for k in ('b1', 'b2', 'b3', 'b4')))
    s_all = jnp.concatenate(ss)
    b_all = jnp.concatenate(bs)
    fp = params['final']
    fs = fp['gamma'] * lax.rsqrt(fp['var'] + EPS)
    fb = fp['beta'] - fp['mean'] * fs
    aff1 = jnp.stack([jnp.tile(s_all, W), jnp.tile(b_all, W)], axis=0)   # (2, W*Ctot)
    aff2 = jnp.stack([jnp.tile(fs, Wo), jnp.tile(fb, Wo)], axis=0)       # (2, Wo*Ctot)
    return aff1, aff2


# -------------------------------- wrapper ----------------------------------- #

def inception_forward(x_nchw, params, images_per_step=4):
    # TODO(synk): BatchNorm is implemented in eval() mode (running statistics
    # folded into scale/bias); PyTorch default train-mode batch statistics are
    # not computed.
    N, Cin, H, W = x_nchw.shape
    a = params['b1']['w'].shape[-1]
    b = params['b2']['w'].shape[-1]
    c = params['b3']['w'].shape[-1]
    pp = params['b4']['w'].shape[-1]
    Ctot = a + b + c + pp
    Ho, Wo = H // 2, W // 2
    Hp, Wp = H + 2 * PAD, W + 2 * PAD

    assert H % 2 == 0 and W % 2 == 0, "2x2/s2 final pool requires even H and W"

    # Images per grid step: divisor of N, capped so that >=2 grid steps remain
    # (keeps both v7x TensorCores busy); per-step VMEM stays far below limits.
    cap = min(images_per_step, N if N < 2 else max(1, N // 2))
    NB = max(d for d in range(1, cap + 1) if N % d == 0)
    assert NB == N or (NB * Ho) % 8 == 0, \
        "output block sublane dim (NB*Ho) must be a multiple of 8"

    # Lane-dense layouts: input (N, Hp, Wp*Cin), output (N*Ho, Wo*Ctot).
    # transpose + zero-pad + reshape fuse into a single XLA copy of x.
    x = jnp.transpose(x_nchw, (0, 2, 3, 1)).astype(jnp.float32)          # NHWC
    x_p = jnp.pad(x, ((0, 0), (PAD, PAD), (PAD, PAD), (0, 0))).reshape(N, Hp, Wp * Cin)

    conv = _merged_conv_kernel(params, Cin, a, b, c, Ctot)
    w_conv = _banded_conv_weights(conv, W, Wp, Cin, Ctot).astype(jnp.bfloat16)
    w_pool = _pool_proj_weights(params, W, Cin, a, b, c, Ctot).astype(jnp.bfloat16)
    aff1, aff2 = _folded_affines(params, W, Wo, Ctot)

    out2d = pl.pallas_call(
        make_fused_inception_kernel(NB, H, W, Cin, Ctot),
        out_shape=jax.ShapeDtypeStruct((N * Ho, Wo * Ctot), jnp.float32),
        grid=(N // NB,),
        in_specs=[
            pl.BlockSpec((NB, Hp, Wp * Cin), lambda n: (n, 0, 0)),
            pl.BlockSpec((5, Wp * Cin, W * Ctot), lambda n: (0, 0, 0)),
            pl.BlockSpec((W * Cin, W * Ctot), lambda n: (0, 0)),
            pl.BlockSpec((2, W * Ctot), lambda n: (0, 0)),
            pl.BlockSpec((2, Wo * Ctot), lambda n: (0, 0)),
        ],
        out_specs=pl.BlockSpec((NB * Ho, Wo * Ctot), lambda n: (n, 0)),
        compiler_params=pltpu.CompilerParams(dimension_semantics=("parallel",)),
    )(x_p, w_conv, w_pool, aff1, aff2)

    out = out2d.reshape(N, Ho, Wo, Ctot)
    return jnp.transpose(out, (0, 3, 1, 2))                              # back to NCHW


# --------------------------- params & reference ----------------------------- #

def init_params(key, Cin, a, b, c, pool_proj):
    def branch(k, K, Cout):
        ks = jax.random.split(k, 6)
        return dict(
            w=0.2 * jax.random.normal(ks[0], (K, K, Cin, Cout), jnp.float32),
            conv_b=0.1 * jax.random.normal(ks[1], (Cout,), jnp.float32),
            gamma=1.0 + 0.1 * jax.random.normal(ks[2], (Cout,), jnp.float32),
            beta=0.1 * jax.random.normal(ks[3], (Cout,), jnp.float32),
            mean=0.1 * jax.random.normal(ks[4], (Cout,), jnp.float32),
            var=0.5 + jnp.abs(jax.random.normal(ks[5], (Cout,), jnp.float32)),
        )
    ks = jax.random.split(key, 5)
    kf = jax.random.split(ks[4], 4)
    Ctot = a + b + c + pool_proj
    return dict(
        b1=branch(ks[0], 1, a),
        b2=branch(ks[1], 3, b),
        b3=branch(ks[2], 5, c),
        b4=branch(ks[3], 1, pool_proj),
        final=dict(
            gamma=1.0 + 0.1 * jax.random.normal(kf[0], (Ctot,), jnp.float32),
            beta=0.1 * jax.random.normal(kf[1], (Ctot,), jnp.float32),
            mean=0.1 * jax.random.normal(kf[2], (Ctot,), jnp.float32),
            var=0.5 + jnp.abs(jax.random.normal(kf[3], (Ctot,), jnp.float32)),
        ),
    )


def reference(x, params, matmul_dtype=None):
    """Pure-JAX (XLA) mirror of the PyTorch forward in eval mode.
    If matmul_dtype is set, conv inputs/weights are rounded to that dtype before
    the (f32-accumulated) convolution, matching the kernel's MXU operand precision."""
    def q(v):
        return v if matmul_dtype is None else v.astype(matmul_dtype).astype(jnp.float32)

    def conv(x, w_hwio, bias, pad):
        y = lax.conv_general_dilated(
            q(x), q(w_hwio), window_strides=(1, 1),
            padding=[(pad, pad), (pad, pad)],
            dimension_numbers=('NCHW', 'HWIO', 'NCHW'),
            precision=lax.Precision.HIGHEST)
        return y + bias[None, :, None, None]

    def bn(x, p):
        g, bt, m, v = p['gamma'], p['beta'], p['mean'], p['var']
        return (g[None, :, None, None] * (x - m[None, :, None, None])
                / jnp.sqrt(v[None, :, None, None] + EPS) + bt[None, :, None, None])

    def relu(x):
        return jnp.maximum(x, 0.0)

    def maxpool(x, k, s, pad):
        return lax.reduce_window(x, -jnp.inf, lax.max, (1, 1, k, k), (1, 1, s, s),
                                 [(0, 0), (0, 0), (pad, pad), (pad, pad)])

    p = params
    b1 = relu(bn(conv(x, p['b1']['w'], p['b1']['conv_b'], 0), p['b1']))
    b2 = relu(bn(conv(x, p['b2']['w'], p['b2']['conv_b'], 1), p['b2']))
    b3 = relu(bn(conv(x, p['b3']['w'], p['b3']['conv_b'], 2), p['b3']))
    b4 = relu(bn(conv(maxpool(x, 3, 1, 1), p['b4']['w'], p['b4']['conv_b'], 0), p['b4']))
    out = jnp.concatenate([b1, b2, b3, b4], axis=1)
    out = maxpool(out, 2, 2, 0)
    return bn(out, p['final'])


# --------------------------------- main ------------------------------------- #

if __name__ == "__main__":
    key = jax.random.PRNGKey(0)
    kx, kp = jax.random.split(key)

    N, Cin, H, W = 2, 4, 16, 16
    a_ch, b_ch, c_ch, proj_ch = 8, 8, 8, 8

    x = jax.random.normal(kx, (N, Cin, H, W), jnp.float32)        # NCHW like PyTorch
    params = init_params(kp, Cin, a_ch, b_ch, c_ch, proj_ch)

    out = jax.block_until_ready(inception_forward(x, params))
    assert out.shape == (N, a_ch + b_ch + c_ch + proj_ch, H // 2, W // 2), out.shape

    # Tight structural check: reference with the kernel's bf16 matmul-operand
    # precision (f32 accumulation) -> agreement to f32 rounding noise.
    ref_bf16 = jax.block_until_ready(reference(x, params, matmul_dtype=jnp.bfloat16))
    err_tight = float(jnp.max(jnp.abs(out - ref_bf16)))
    if err_tight > 2e-3:
        raise AssertionError(f"mismatch vs bf16-operand reference: max abs err = {err_tight}")

    # Loose sanity check vs the exact f32 module semantics: the only deviation is
    # bf16 rounding of the matmul operands (standard TPU inference practice).
    ref_f32 = jax.block_until_ready(reference(x, params))
    err_f32 = float(jnp.max(jnp.abs(out - ref_f32)))
    if err_f32 > 1e-1:
        raise AssertionError(f"mismatch vs f32 reference: max abs err = {err_f32}")

    print("KERNEL_OK")
</pallas_src>

<mosaic_0001>
module attributes {stable_mosaic.version = 11 : i64} {
  func.func @kernel(%arg0: i32, %arg1: memref<1x20x80xf32, #tpu.memory_space<vmem>>, %arg2: memref<5x80x512xbf16, #tpu.memory_space<vmem>>, %arg3: memref<64x512xbf16, #tpu.memory_space<vmem>>, %arg4: memref<2x512xf32, #tpu.memory_space<vmem>>, %arg5: memref<2x256xf32, #tpu.memory_space<vmem>>, %arg6: memref<8x256xf32, #tpu.memory_space<vmem>>) attributes {dimension_semantics = [#tpu.dimension_semantics<parallel>], iteration_bounds = array<i64: 2>, scalar_prefetch = 0 : i64, scratch_operands = 0 : i64, tpu.core_type = #tpu.core_type<tc>, window_params = [{transform_indices = @transform_0, window_bounds = array<i64: 1, 20, 80>}, {pipeline_mode = #tpu.pipeline_mode<synchronous>, transform_indices = @transform_1, window_bounds = array<i64: 5, 80, 512>}, {pipeline_mode = #tpu.pipeline_mode<synchronous>, transform_indices = @transform_2, window_bounds = array<i64: 64, 512>}, {pipeline_mode = #tpu.pipeline_mode<synchronous>, transform_indices = @transform_3, window_bounds = array<i64: 2, 512>}, {pipeline_mode = #tpu.pipeline_mode<synchronous>, transform_indices = @transform_4, window_bounds = array<i64: 2, 256>}, {transform_indices = @transform_5, window_bounds = array<i64: 8, 256>}]} {
    %c0 = arith.constant 0 : index
    %c0_0 = arith.constant 0 : index
    %c0_1 = arith.constant 0 : index
    %0 = vector.load %arg1[%c0, %c0_0, %c0_1] : memref<1x20x80xf32, #tpu.memory_space<vmem>>, vector<1x20x80xf32>
    %1 = vector.extract_strided_slice %0 {offsets = [0, 0, 0], sizes = [1, 16, 80], strides = [1, 1, 1]} : vector<1x20x80xf32> to vector<1x16x80xf32>
    %2 = vector.shape_cast %1 : vector<1x16x80xf32> to vector<16x80xf32>
    %3 = arith.truncf %2 : vector<16x80xf32> to vector<16x80xbf16>
    %c0_2 = arith.constant 0 : index
    %c0_3 = arith.constant 0 : index
    %c0_4 = arith.constant 0 : index
    %4 = vector.load %arg2[%c0_2, %c0_3, %c0_4] : memref<5x80x512xbf16, #tpu.memory_space<vmem>>, vector<1x80x512xbf16>
    %5 = vector.shape_cast %4 : vector<1x80x512xbf16> to vector<80x512xbf16>
    %cst = arith.constant dense<0.000000e+00> : vector<16x512xf32>
    %6 = tpu.matmul %3, %5, %cst {dimension_numbers = #tpu.dot_dimension_numbers<[1], [0], [0], [1], [0, 0, 1, 1], [], []>} : vector<16x80xbf16>, vector<80x512xbf16>, vector<16x512xf32> -> vector<16x512xf32>
    %7 = vector.extract_strided_slice %0 {offsets = [0, 1, 0], sizes = [1, 16, 80], strides = [1, 1, 1]} : vector<1x20x80xf32> to vector<1x16x80xf32>
    %8 = vector.shape_cast %7 : vector<1x16x80xf32> to vector<16x80xf32>
    %9 = arith.truncf %8 : vector<16x80xf32> to vector<16x80xbf16>
    %c1 = arith.constant 1 : index
    %c0_5 = arith.constant 0 : index
    %c0_6 = arith.constant 0 : index
    %10 = vector.load %arg2[%c1, %c0_5, %c0_6] : memref<5x80x512xbf16, #tpu.memory_space<vmem>>, vector<1x80x512xbf16>
    %11 = vector.shape_cast %10 : vector<1x80x512xbf16> to vector<80x512xbf16>
    %cst_7 = arith.constant dense<0.000000e+00> : vector<16x512xf32>
    %12 = tpu.matmul %9, %11, %cst_7 {dimension_numbers = #tpu.dot_dimension_numbers<[1], [0], [0], [1], [0, 0, 1, 1], [], []>} : vector<16x80xbf16>, vector<80x512xbf16>, vector<16x512xf32> -> vector<16x512xf32>
    %13 = arith.addf %6, %12 : vector<16x512xf32>
    %14 = vector.extract_strided_slice %0 {offsets = [0, 2, 0], sizes = [1, 16, 80], strides = [1, 1, 1]} : vector<1x20x80xf32> to vector<1x16x80xf32>
    %15 = vector.shape_cast %14 : vector<1x16x80xf32> to vector<16x80xf32>
    %16 = arith.truncf %15 : vector<16x80xf32> to vector<16x80xbf16>
    %c2 = arith.constant 2 : index
    %c0_8 = arith.constant 0 : index
    %c0_9 = arith.constant 0 : index
    %17 = vector.load %arg2[%c2, %c0_8, %c0_9] : memref<5x80x512xbf16, #tpu.memory_space<vmem>>, vector<1x80x512xbf16>
    %18 = vector.shape_cast %17 : vector<1x80x512xbf16> to vector<80x512xbf16>
    %cst_10 = arith.constant dense<0.000000e+00> : vector<16x512xf32>
    %19 = tpu.matmul %16, %18, %cst_10 {dimension_numbers = #tpu.dot_dimension_numbers<[1], [0], [0], [1], [0, 0, 1, 1], [], []>} : vector<16x80xbf16>, vector<80x512xbf16>, vector<16x512xf32> -> vector<16x512xf32>
    %20 = arith.addf %13, %19 : vector<16x512xf32>
    %21 = vector.extract_strided_slice %0 {offsets = [0, 3, 0], sizes = [1, 16, 80], strides = [1, 1, 1]} : vector<1x20x80xf32> to vector<1x16x80xf32>
    %22 = vector.shape_cast %21 : vector<1x16x80xf32> to vector<16x80xf32>
    %23 = arith.truncf %22 : vector<16x80xf32> to vector<16x80xbf16>
    %c3 = arith.constant 3 : index
    %c0_11 = arith.constant 0 : index
    %c0_12 = arith.constant 0 : index
    %24 = vector.load %arg2[%c3, %c0_11, %c0_12] : memref<5x80x512xbf16, #tpu.memory_space<vmem>>, vector<1x80x512xbf16>
    %25 = vector.shape_cast %24 : vector<1x80x512xbf16> to vector<80x512xbf16>
    %cst_13 = arith.constant dense<0.000000e+00> : vector<16x512xf32>
    %26 = tpu.matmul %23, %25, %cst_13 {dimension_numbers = #tpu.dot_dimension_numbers<[1], [0], [0], [1], [0, 0, 1, 1], [], []>} : vector<16x80xbf16>, vector<80x512xbf16>, vector<16x512xf32> -> vector<16x512xf32>
    %27 = arith.addf %20, %26 : vector<16x512xf32>
    %28 = vector.extract_strided_slice %0 {offsets = [0, 4, 0], sizes = [1, 16, 80], strides = [1, 1, 1]} : vector<1x20x80xf32> to vector<1x16x80xf32>
    %29 = vector.shape_cast %28 : vector<1x16x80xf32> to vector<16x80xf32>
    %30 = arith.truncf %29 : vector<16x80xf32> to vector<16x80xbf16>
    %c4 = arith.constant 4 : index
    %c0_14 = arith.constant 0 : index
    %c0_15 = arith.constant 0 : index
    %31 = vector.load %arg2[%c4, %c0_14, %c0_15] : memref<5x80x512xbf16, #tpu.memory_space<vmem>>, vector<1x80x512xbf16>
    %32 = vector.shape_cast %31 : vector<1x80x512xbf16> to vector<80x512xbf16>
    %cst_16 = arith.constant dense<0.000000e+00> : vector<16x512xf32>
    %33 = tpu.matmul %30, %32, %cst_16 {dimension_numbers = #tpu.dot_dimension_numbers<[1], [0], [0], [1], [0, 0, 1, 1], [], []>} : vector<16x80xbf16>, vector<80x512xbf16>, vector<16x512xf32> -> vector<16x512xf32>
    %34 = arith.addf %27, %33 : vector<16x512xf32>
    %35 = tpu.iota {dimensions = array<i32: 1>} : vector<1x20x80xi32>
    %36 = tpu.iota {dimensions = array<i32: 2>} : vector<1x20x80xi32>
    %c1_i32 = arith.constant 1 : i32
    %37 = vector.broadcast %c1_i32 : i32 to vector<1x20x80xi32>
    %38 = arith.cmpi eq, %35, %37 : vector<1x20x80xi32>
    %c18_i32 = arith.constant 18 : i32
    %39 = vector.broadcast %c18_i32 : i32 to vector<1x20x80xi32>
    %40 = arith.cmpi eq, %35, %39 : vector<1x20x80xi32>
    %41 = arith.ori %38, %40 : vector<1x20x80xi1>
    %c4_i32 = arith.constant 4 : i32
    %42 = vector.broadcast %c4_i32 : i32 to vector<1x20x80xi32>
    %43 = arith.cmpi sge, %36, %42 : vector<1x20x80xi32>
    %c8_i32 = arith.constant 8 : i32
    %44 = vector.broadcast %c8_i32 : i32 to vector<1x20x80xi32>
    %45 = arith.cmpi slt, %36, %44 : vector<1x20x80xi32>
    %46 = arith.andi %43, %45 : vector<1x20x80xi1>
    %47 = arith.ori %41, %46 : vector<1x20x80xi1>
    %c72_i32 = arith.constant 72 : i32
    %48 = vector.broadcast %c72_i32 : i32 to vector<1x20x80xi32>
    %49 = arith.cmpi sge, %36, %48 : vector<1x20x80xi32>
    %c76_i32 = arith.constant 76 : i32
    %50 = vector.broadcast %c76_i32 : i32 to vector<1x20x80xi32>
    %51 = arith.cmpi slt, %36, %50 : vector<1x20x80xi32>
    %52 = arith.andi %49, %51 : vector<1x20x80xi1>
    %53 = arith.ori %47, %52 : vector<1x20x80xi1>
    %cst_17 = arith.constant -1.000000e+30 : f32
    %54 = vector.broadcast %cst_17 : f32 to vector<1x20x80xf32>
    %55 = arith.select %53, %54, %0 : vector<1x20x80xi1>, vector<1x20x80xf32>
    %56 = vector.extract_strided_slice %55 {offsets = [0, 1, 4], sizes = [1, 16, 64], strides = [1, 1, 1]} : vector<1x20x80xf32> to vector<1x16x64xf32>
    %57 = vector.extract_strided_slice %55 {offsets = [0, 1, 8], sizes = [1, 16, 64], strides = [1, 1, 1]} : vector<1x20x80xf32> to vector<1x16x64xf32>
    %58 = arith.maximumf %56, %57 : vector<1x16x64xf32>
    %59 = vector.extract_strided_slice %55 {offsets = [0, 1, 12], sizes = [1, 16, 64], strides = [1, 1, 1]} : vector<1x20x80xf32> to vector<1x16x64xf32>
    %60 = arith.maximumf %58, %59 : vector<1x16x64xf32>
    %61 = vector.extract_strided_slice %55 {offsets = [0, 2, 4], sizes = [1, 16, 64], strides = [1, 1, 1]} : vector<1x20x80xf32> to vector<1x16x64xf32>
    %62 = arith.maximumf %60, %61 : vector<1x16x64xf32>
    %63 = vector.extract_strided_slice %55 {offsets = [0, 2, 8], sizes = [1, 16, 64], strides = [1, 1, 1]} : vector<1x20x80xf32> to vector<1x16x64xf32>
    %64 = arith.maximumf %62, %63 : vector<1x16x64xf32>
    %65 = vector.extract_strided_slice %55 {offsets = [0, 2, 12], sizes = [1, 16, 64], strides = [1, 1, 1]} : vector<1x20x80xf32> to vector<1x16x64xf32>
    %66 = arith.maximumf %64, %65 : vector<1x16x64xf32>
    %67 = vector.extract_strided_slice %55 {offsets = [0, 3, 4], sizes = [1, 16, 64], strides = [1, 1, 1]} : vector<1x20x80xf32> to vector<1x16x64xf32>
    %68 = arith.maximumf %66, %67 : vector<1x16x64xf32>
    %69 = vector.extract_strided_slice %55 {offsets = [0, 3, 8], sizes = [1, 16, 64], strides = [1, 1, 1]} : vector<1x20x80xf32> to vector<1x16x64xf32>
    %70 = arith.maximumf %68, %69 : vector<1x16x64xf32>
    %71 = vector.extract_strided_slice %55 {offsets = [0, 3, 12], sizes = [1, 16, 64], strides = [1, 1, 1]} : vector<1x20x80xf32> to vector<1x16x64xf32>
    %72 = arith.maximumf %70, %71 : vector<1x16x64xf32>
    %73 = vector.shape_cast %72 : vector<1x16x64xf32> to vector<16x64xf32>
    %74 = arith.truncf %73 : vector<16x64xf32> to vector<16x64xbf16>
    %c0_18 = arith.constant 0 : index
    %c0_19 = arith.constant 0 : index
    %75 = vector.load %arg3[%c0_18, %c0_19] : memref<64x512xbf16, #tpu.memory_space<vmem>>, vector<64x512xbf16>
    %cst_20 = arith.constant dense<0.000000e+00> : vector<16x512xf32>
    %76 = tpu.matmul %74, %75, %cst_20 {dimension_numbers = #tpu.dot_dimension_numbers<[1], [0], [0], [1], [0, 0, 1, 1], [], []>} : vector<16x64xbf16>, vector<64x512xbf16>, vector<16x512xf32> -> vector<16x512xf32>
    %77 = arith.addf %34, %76 : vector<16x512xf32>
    %c0_21 = arith.constant 0 : index
    %c0_22 = arith.constant 0 : index
    %78 = vector.load %arg4[%c0_21, %c0_22] : memref<2x512xf32, #tpu.memory_space<vmem>>, vector<2x512xf32>
    %79 = vector.extract_strided_slice %78 {offsets = [0, 0], sizes = [1, 512], strides = [1, 1]} : vector<2x512xf32> to vector<1x512xf32>
    %80 = vector.broadcast %79 : vector<1x512xf32> to vector<16x512xf32>
    %81 = arith.mulf %77, %80 : vector<16x512xf32>
    %82 = vector.extract_strided_slice %78 {offsets = [1, 0], sizes = [1, 512], strides = [1, 1]} : vector<2x512xf32> to vector<1x512xf32>
    %83 = vector.broadcast %82 : vector<1x512xf32> to vector<16x512xf32>
    %84 = arith.addf %81, %83 : vector<16x512xf32>
    %cst_23 = arith.constant 0.000000e+00 : f32
    %85 = vector.broadcast %cst_23 : f32 to vector<16x512xf32>
    %86 = arith.maximumf %84, %85 : vector<16x512xf32>
    %87 = vector.shape_cast %86 : vector<16x512xf32> to vector<8x2x512xf32>
    %88 = vector.extract_strided_slice %87 {offsets = [0, 0, 0], sizes = [8, 1, 512], strides = [1, 1, 1]} : vector<8x2x512xf32> to vector<8x1x512xf32>
    %89 = vector.shape_cast %88 : vector<8x1x512xf32> to vector<8x512xf32>
    %90 = vector.extract_strided_slice %87 {offsets = [0, 1, 0], sizes = [8, 1, 512], strides = [1, 1, 1]} : vector<8x2x512xf32> to vector<8x1x512xf32>
    %91 = vector.shape_cast %90 : vector<8x1x512xf32> to vector<8x512xf32>
    %92 = arith.maximumf %89, %91 : vector<8x512xf32>
    %93 = vector.extract_strided_slice %92 {offsets = [0, 0], sizes = [8, 32], strides = [1, 1]} : vector<8x512xf32> to vector<8x32xf32>
    %94 = vector.extract_strided_slice %92 {offsets = [0, 32], sizes = [8, 32], strides = [1, 1]} : vector<8x512xf32> to vector<8x32xf32>
    %95 = arith.maximumf %93, %94 : vector<8x32xf32>
    %96 = vector.extract_strided_slice %92 {offsets = [0, 64], sizes = [8, 32], strides = [1, 1]} : vector<8x512xf32> to vector<8x32xf32>
    %97 = vector.extract_strided_slice %92 {offsets = [0, 96], sizes = [8, 32], strides = [1, 1]} : vector<8x512xf32> to vector<8x32xf32>
    %98 = arith.maximumf %96, %97 : vector<8x32xf32>
    %99 = vector.extract_strided_slice %92 {offsets = [0, 128], sizes = [8, 32], strides = [1, 1]} : vector<8x512xf32> to vector<8x32xf32>
    %100 = vector.extract_strided_slice %92 {offsets = [0, 160], sizes = [8, 32], strides = [1, 1]} : vector<8x512xf32> to vector<8x32xf32>
    %101 = arith.maximumf %99, %100 : vector<8x32xf32>
    %102 = vector.extract_strided_slice %92 {offsets = [0, 192], sizes = [8, 32], strides = [1, 1]} : vector<8x512xf32> to vector<8x32xf32>
    %103 = vector.extract_strided_slice %92 {offsets = [0, 224], sizes = [8, 32], strides = [1, 1]} : vector<8x512xf32> to vector<8x32xf32>
    %104 = arith.maximumf %102, %103 : vector<8x32xf32>
    %105 = vector.extract_strided_slice %92 {offsets = [0, 256], sizes = [8, 32], strides = [1, 1]} : vector<8x512xf32> to vector<8x32xf32>
    %106 = vector.extract_strided_slice %92 {offsets = [0, 288], sizes = [8, 32], strides = [1, 1]} : vector<8x512xf32> to vector<8x32xf32>
    %107 = arith.maximumf %105, %106 : vector<8x32xf32>
    %108 = vector.extract_strided_slice %92 {offsets = [0, 320], sizes = [8, 32], strides = [1, 1]} : vector<8x512xf32> to vector<8x32xf32>
    %109 = vector.extract_strided_slice %92 {offsets = [0, 352], sizes = [8, 32], strides = [1, 1]} : vector<8x512xf32> to vector<8x32xf32>
    %110 = arith.maximumf %108, %109 : vector<8x32xf32>
    %111 = vector.extract_strided_slice %92 {offsets = [0, 384], sizes = [8, 32], strides = [1, 1]} : vector<8x512xf32> to vector<8x32xf32>
    %112 = vector.extract_strided_slice %92 {offsets = [0, 416], sizes = [8, 32], strides = [1, 1]} : vector<8x512xf32> to vector<8x32xf32>
    %113 = arith.maximumf %111, %112 : vector<8x32xf32>
    %114 = vector.extract_strided_slice %92 {offsets = [0, 448], sizes = [8, 32], strides = [1, 1]} : vector<8x512xf32> to vector<8x32xf32>
    %115 = vector.extract_strided_slice %92 {offsets = [0, 480], sizes = [8, 32], strides = [1, 1]} : vector<8x512xf32> to vector<8x32xf32>
    %116 = arith.maximumf %114, %115 : vector<8x32xf32>
    %117 = tpu.concatenate %95, %98, %101, %104, %107, %110, %113, %116 in 1 : vector<8x32xf32>, vector<8x32xf32>, vector<8x32xf32>, vector<8x32xf32>, vector<8x32xf32>, vector<8x32xf32>, vector<8x32xf32>, vector<8x32xf32> -> vector<8x256xf32>
    %c0_24 = arith.constant 0 : index
    %c0_25 = arith.constant 0 : index
    %118 = vector.load %arg5[%c0_24, %c0_25] : memref<2x256xf32, #tpu.memory_space<vmem>>, vector<2x256xf32>
    %119 = vector.extract_strided_slice %118 {offsets = [0, 0], sizes = [1, 256], strides = [1, 1]} : vector<2x256xf32> to vector<1x256xf32>
    %120 = vector.broadcast %119 : vector<1x256xf32> to vector<8x256xf32>
    %121 = arith.mulf %117, %120 : vector<8x256xf32>
    %122 = vector.extract_strided_slice %118 {offsets = [1, 0], sizes = [1, 256], strides = [1, 1]} : vector<2x256xf32> to vector<1x256xf32>
    %123 = vector.broadcast %122 : vector<1x256xf32> to vector<8x256xf32>
    %124 = arith.addf %121, %123 : vector<8x256xf32>
    %c0_26 = arith.constant 0 : index
    %c0_27 = arith.constant 0 : index
    %125 = vector.load %arg6[%c0_26, %c0_27] : memref<8x256xf32, #tpu.memory_space<vmem>>, vector<8x256xf32>
    tpu.vector_store %arg6[%c0_26, %c0_27], %124 {strides = array<i32>} : memref<8x256xf32, #tpu.memory_space<vmem>>, vector<8x256xf32>,
    return
  }
  func.func @transform_0(%arg0: i32) -> (i32, i32, i32) {
    %c0_i32 = arith.constant 0 : i32
    %c0_i32_0 = arith.constant 0 : i32
    %c0_i32_1 = arith.constant 0 : i32
    return %arg0, %c0_i32, %c0_i32_0 : i32, i32, i32
  }
  func.func @transform_1(%arg0: i32) -> (i32, i32, i32) {
    %c0_i32 = arith.constant 0 : i32
    %c0_i32_0 = arith.constant 0 : i32
    %c0_i32_1 = arith.constant 0 : i32
    %c0_i32_2 = arith.constant 0 : i32
    return %c0_i32, %c0_i32_0, %c0_i32_1 : i32, i32, i32
  }
  func.func @transform_2(%arg0: i32) -> (i32, i32) {
    %c0_i32 = arith.constant 0 : i32
    %c0_i32_0 = arith.constant 0 : i32
    %c0_i32_1 = arith.constant 0 : i32
    return %c0_i32, %c0_i32_0 : i32, i32
  }
  func.func @transform_3(%arg0: i32) -> (i32, i32) {
    %c0_i32 = arith.constant 0 : i32
    %c0_i32_0 = arith.constant 0 : i32
    %c0_i32_1 = arith.constant 0 : i32
    return %c0_i32, %c0_i32_0 : i32, i32
  }
  func.func @transform_4(%arg0: i32) -> (i32, i32) {
    %c0_i32 = arith.constant 0 : i32
    %c0_i32_0 = arith.constant 0 : i32
    %c0_i32_1 = arith.constant 0 : i32
    return %c0_i32, %c0_i32_0 : i32, i32
  }
  func.func @transform_5(%arg0: i32) -> (i32, i32) {
    %c0_i32 = arith.constant 0 : i32
    %c0_i32_0 = arith.constant 0 : i32
    return %arg0, %c0_i32 : i32, i32
  }
}

</mosaic_0001>

<llo_original>
// kernel: tpu_custom_call.1
$region0: #{tpu_custom_call.1}
  #allocation0 [shape = 'u32[]', space=smem, size = 0x4, offset = 0x4, fixed_abs, tag = 'smem constant byte address 0x4 - core index']
  #allocation1 [shape = 'u32[144,128]{1,0:T(1,128)}', space=vmem, size = 0x12000, scoped, tag = 'internal scratch']
  %s0 = inlined_call_operand.vmem [shape: f32[2,20,80], index: 0, kind: input, shape index: {}]
  %s1 = inlined_call_operand.hbm [shape: bf16[5,80,512], index: 1, kind: input, shape index: {}]
  %s2 = inlined_call_operand.hbm [shape: bf16[64,512], index: 2, kind: input, shape index: {}]
  %s3 = inlined_call_operand.vmem [shape: f32[2,512], index: 3, kind: input, shape index: {}]
  %s4 = inlined_call_operand.vmem [shape: f32[2,256], index: 4, kind: input, shape index: {}]
  %s5 = inlined_call_operand.hbm [shape: f32[16,256], index: 5, kind: output, shape index: {}]
  %s6 = sld [smem:[#allocation0]]
  $region61: #{tpu_custom_call.1} parent=0
    _
  %s8 = ssub.s32 1, %s6
  %s9 = scalar_select 0, %s8, %s6
  $region1: #{tpu_custom_call.1} parent=0
    #allocation2 [shape = 'u8[409600]{0}', space=vmem, size = 0x64000, scoped, tag = 'input window, operand 1, single buffered']
    #allocation3 [shape = 's32[2]{0}', space=sflag, size = 0x8, scoped, tag = 'scoped memory for tpu_custom_call.1']
    #allocation4 [shape = 's32[2]{0}', space=sflag, size = 0x8, scoped, tag = 'scoped memory for tpu_custom_call.1']
    #allocation5 [shape = 'u8[65536]{0}', space=vmem, size = 0x10000, scoped, tag = 'input window, operand 2, single buffered']
    #allocation6 [shape = 's32[1]{0}', space=sflag, size = 0x4, scoped, tag = 'scoped memory for tpu_custom_call.1']
    #allocation7 [shape = 'u8[16384]{0}', space=vmem, size = 0x4000, scoped, tag = 'output window, operand 0']
    %10 = vsyncpa [#allocation3], 0
    %11 = vsyncpa [#allocation6], 0
    %12 = vsyncpa [#allocation4], 0
    %s13 = scalar_lea.sflag [#allocation4], 1
    %14 = vsyncpa %s13, 0
    loop: start=0, step=1, limit=4
    $region2: #{tpu_custom_call.1} parent=1 // loop_pre_header
      _
    $region3: #{tpu_custom_call.1} parent=1 // loop_header
      %s16 = sphi 0, %s20
      %p17 = scmp.ge.s32.totalorder %s16, 4
      %s26 = sphi 0, %s28
      %s29 = sphi 0, %s26
      %s30 = sphi 0, %s29
      %s46 = sphi 0, %s30
      %s50 = sphi 0, %s50
      %s52 = sphi 0, %s50
      %s53 = sphi 0, %s52
      %s67 = sphi 0, %s53
      %s71 = sphi 0, %s71
      %s73 = sphi 0, %s71
      %s74 = sphi 0, %s73
      %s88 = sphi 0, %s74
      %s92 = sphi 0, %s92
      %s94 = sphi 0, %s92
      %s95 = sphi 0, %s94
      %s109 = sphi 0, %s95
      %s113 = sphi 0, %s113
      %s115 = sphi 0, %s113
      %s116 = sphi 0, %s115
      %s130 = sphi 0, %s116
      %s136 = sphi 0, %s138
      %s139 = sphi 0, %s136
      %s140 = sphi 0, %s139
      %s156 = sphi 0, %s140
    $region4: #{tpu_custom_call.1} parent=1 // loop_header_branch
      %19 = sbr.rel (%p17) target = $region8
    $region5: #{tpu_custom_call.1} parent=1 // loop_body
      %s21 = ssub.s32 %s16, 1
      %s22 = ssub.s32 %s16, 2
      %s23 = sadd.s32 %s16, 1
      %s24 = ssub.s32 %s16, %s23
      %p25 = scmp.eq.s32.totalorder %s24, 0
      %s27 = sadd.s32 %s26, 1
      %s28 = scalar_select %p25, %s26, %s27
      %p31 = pneg %p25
      %p32 = scmp.eq.s32.totalorder %s16, 1
      %p33 = por %p31, %p32
      %p34 = scmp.ne.s32.totalorder %s26, %s29
      %p35 = scmp.eq.s32.totalorder %s16, 0
      %p36 = por %p34, %p35
      %p37 = scmp.ne.s32.totalorder %s26, %s29
      %p38 = scmp.eq.s32.totalorder %s21, 1
      %p39 = por %p37, %p38
      %p40 = scmp.ne.s32.totalorder %s29, %s30
      %p41 = scmp.eq.s32.totalorder %s21, 0
      %p42 = por %p40, %p41
      %p43 = scmp.ne.s32.totalorder %s29, %s30
      %p44 = scmp.eq.s32.totalorder %s22, 1
      %p45 = por %p43, %p44
      %p47 = scmp.ne.s32.totalorder %s30, %s46
      %p48 = scmp.eq.s32.totalorder %s22, 0
      %p49 = por %p47, %p48
      %s51 = sadd.s32 %s50, 1
      %p54 = scmp.eq.s32.totalorder %s16, 1
      %p55 = scmp.ne.s32.totalorder %s50, %s52
      %p56 = scmp.eq.s32.totalorder %s16, 0
      %p57 = por %p55, %p56
      %p58 = scmp.ne.s32.totalorder %s50, %s52
      %p59 = scmp.eq.s32.totalorder %s21, 1
      %p60 = por %p58, %p59
      %p61 = scmp.ne.s32.totalorder %s52, %s53
      %p62 = scmp.eq.s32.totalorder %s21, 0
      %p63 = por %p61, %p62
      %p64 = scmp.ne.s32.totalorder %s52, %s53
      %p65 = scmp.eq.s32.totalorder %s22, 1
      %p66 = por %p64, %p65
      %p68 = scmp.ne.s32.totalorder %s53, %s67
      %p69 = scmp.eq.s32.totalorder %s22, 0
      %p70 = por %p68, %p69
      %s72 = sadd.s32 %s71, 1
      %p75 = scmp.eq.s32.totalorder %s16, 1
      %p76 = scmp.ne.s32.totalorder %s71, %s73
      %p77 = scmp.eq.s32.totalorder %s16, 0
      %p78 = por %p76, %p77
      %p79 = scmp.ne.s32.totalorder %s71, %s73
      %p80 = scmp.eq.s32.totalorder %s21, 1
      %p81 = por %p79, %p80
      %p82 = scmp.ne.s32.totalorder %s73, %s74
      %p83 = scmp.eq.s32.totalorder %s21, 0
      %p84 = por %p82, %p83
      %p85 = scmp.ne.s32.totalorder %s73, %s74
      %p86 = scmp.eq.s32.totalorder %s22, 1
      %p87 = por %p85, %p86
      %p89 = scmp.ne.s32.totalorder %s74, %s88
      %p90 = scmp.eq.s32.totalorder %s22, 0
      %p91 = por %p89, %p90
      %s93 = sadd.s32 %s92, 1
      %p96 = scmp.eq.s32.totalorder %s16, 1
      %p97 = scmp.ne.s32.totalorder %s92, %s94
      %p98 = scmp.eq.s32.totalorder %s16, 0
      %p99 = por %p97, %p98
      %p100 = scmp.ne.s32.totalorder %s92, %s94
      %p101 = scmp.eq.s32.totalorder %s21, 1
      %p102 = por %p100, %p101
      %p103 = scmp.ne.s32.totalorder %s94, %s95
      %p104 = scmp.eq.s32.totalorder %s21, 0
      %p105 = por %p103, %p104
      %p106 = scmp.ne.s32.totalorder %s94, %s95
      %p107 = scmp.eq.s32.totalorder %s22, 1
      %p108 = por %p106, %p107
      %p110 = scmp.ne.s32.totalorder %s95, %s109
      %p111 = scmp.eq.s32.totalorder %s22, 0
      %p112 = por %p110, %p111
      %s114 = sadd.s32 %s113, 1
      %p117 = scmp.eq.s32.totalorder %s16, 1
      %p118 = scmp.ne.s32.totalorder %s113, %s115
      %p119 = scmp.eq.s32.totalorder %s16, 0
      %p120 = por %p118, %p119
      %p121 = scmp.ne.s32.totalorder %s113, %s115
      %p122 = scmp.eq.s32.totalorder %s21, 1
      %p123 = por %p121, %p122
      %p124 = scmp.ne.s32.totalorder %s115, %s116
      %p125 = scmp.eq.s32.totalorder %s21, 0
      %p126 = por %p124, %p125
      %p127 = scmp.ne.s32.totalorder %s115, %s116
      %p128 = scmp.eq.s32.totalorder %s22, 1
      %p129 = por %p127, %p128
      %p131 = scmp.ne.s32.totalorder %s116, %s130
      %p132 = scmp.eq.s32.totalorder %s22, 0
      %p133 = por %p131, %p132
      %s134 = ssub.s32 %s16, %s23
      %p135 = scmp.eq.s32.totalorder %s134, 0
      %s137 = sadd.s32 %s136, 1
      %s138 = scalar_select %p135, %s136, %s137
      %p141 = pneg %p135
      %p142 = scmp.eq.s32.totalorder %s16, 1
      %p143 = por %p141, %p142
      %p144 = scmp.ne.s32.totalorder %s136, %s139
      %p145 = scmp.eq.s32.totalorder %s16, 0
      %p146 = por %p144, %p145
      %p147 = scmp.ne.s32.totalorder %s136, %s139
      %p148 = scmp.eq.s32.totalorder %s21, 1
      %p149 = por %p147, %p148
      %p150 = scmp.ne.s32.totalorder %s139, %s140
      %p151 = scmp.eq.s32.totalorder %s21, 0
      %p152 = por %p150, %p151
      %p153 = scmp.ne.s32.totalorder %s139, %s140
      %p154 = scmp.eq.s32.totalorder %s22, 1
      %p155 = por %p153, %p154
      %p157 = scmp.ne.s32.totalorder %s140, %s156
      %p158 = scmp.eq.s32.totalorder %s22, 0
      %p159 = por %p157, %p158
      %p160 = scmp.le.s32.totalorder 1, %s16
      %p161 = scmp.lt.s32.totalorder %s16, 3
      %p162 = pnand %p160, %p161
      %p163 = pneg %p162
      // Predicated region
      $region9: #{tpu_custom_call.1} parent=5 // pred_check
        _
      $region10: #{tpu_custom_call.1} parent=5 // pred_check_branch
        %165 = sbr.rel (%p162) target = $region12
      $region11: #{tpu_custom_call.1} parent=5 // pred_region
        %s166 = ssub.s32 %s16, 1
        // Predicated region
        $region13: #{tpu_custom_call.1} parent=11 // pred_check
          %p167 = pneg %p63
        $region14: #{tpu_custom_call.1} parent=11 // pred_check_branch
          %169 = sbr.rel (%p167) target = $region16
        $region15: #{tpu_custom_call.1} parent=11 // pred_region
          %s171 = ssub.s32 12800, 12800
          %172 = vsyncadd [#allocation3], %s171
          %s173 = sshll.u32 [#allocation2], 4
          %s174 = int_to_ptr.vmem [resolvable:$true] %s173
          %179 = dma.hbm_to_vmem [thread:$0]  %s1, 12800, %s174, [#allocation3], 256, 256, 16
        $region16: #{tpu_custom_call.1} parent=11 // pred_fallthru
          _
        // Predicated region
        $region17: #{tpu_custom_call.1} parent=11 // pred_check
          %p180 = pneg %p84
        $region18: #{tpu_custom_call.1} parent=11 // pred_check_branch
          %182 = sbr.rel (%p180) target = $region20
        $region19: #{tpu_custom_call.1} parent=11 // pred_region
          %s184 = ssub.s32 2048, 2048
          %185 = vsyncadd [#allocation6], %s184
          %s186 = sshll.u32 [#allocation5], 4
          %s187 = int_to_ptr.vmem [resolvable:$true] %s186
          %192 = dma.hbm_to_vmem [thread:$0]  %s2, 2048, %s187, [#allocation6], 256, 256, 16
        $region20: #{tpu_custom_call.1} parent=11 // pred_fallthru
          _
        // Predicated region
        $region21: #{tpu_custom_call.1} parent=11 // pred_check
          %p193 = pneg %p105
        $region22: #{tpu_custom_call.1} parent=11 // pred_check_branch
          %195 = sbr.rel (%p193) target = $region24
        $region23: #{tpu_custom_call.1} parent=11 // pred_region
          _
        $region24: #{tpu_custom_call.1} parent=11 // pred_fallthru
          _
        // Predicated region
        $region25: #{tpu_custom_call.1} parent=11 // pred_check
          %p196 = pneg %p126
        $region26: #{tpu_custom_call.1} parent=11 // pred_check_branch
          %198 = sbr.rel (%p196) target = $region28
        $region27: #{tpu_custom_call.1} parent=11 // pred_region
          _
        $region28: #{tpu_custom_call.1} parent=11 // pred_fallthru
          _
      $region12: #{tpu_custom_call.1} parent=5 // pred_fallthru
        _
      %p199 = scmp.lt.s32.totalorder %s16, 2
      // Predicated region
      $region29: #{tpu_custom_call.1} parent=5 // pred_check
        %p200 = pneg %p199
      $region30: #{tpu_custom_call.1} parent=5 // pred_check_branch
        %202 = sbr.rel (%p200) target = $region32
      $region31: #{tpu_custom_call.1} parent=5 // pred_region
        // Predicated region
        $region33: #{tpu_custom_call.1} parent=31 // pred_check
          %p203 = pneg %p36
        $region34: #{tpu_custom_call.1} parent=31 // pred_check_branch
          %205 = sbr.rel (%p203) target = $region36
        $region35: #{tpu_custom_call.1} parent=31 // pred_region
          %p206 = scmp.lt.s32.totalorder %s16, 1
          %s207 = scalar_select %p206, %s16, 1
          %s208 = smul.addr %s207, 3
          %s209 = smul.addr %s208, 8
          %s210 = scalar_lea.vmem %s0, %s209
        $region36: #{tpu_custom_call.1} parent=31 // pred_fallthru
          _
      $region32: #{tpu_custom_call.1} parent=5 // pred_fallthru
        _
      %p211 = scmp.le.s32.totalorder 1, %s16
      %p212 = scmp.lt.s32.totalorder %s16, 3
      %p213 = pnand %p211, %p212
      %p214 = pneg %p213
      // Predicated region
      $region37: #{tpu_custom_call.1} parent=5 // pred_check
        _
      $region38: #{tpu_custom_call.1} parent=5 // pred_check_branch
        %216 = sbr.rel (%p213) target = $region40
      $region39: #{tpu_custom_call.1} parent=5 // pred_region
        %s217 = ssub.s32 %s16, 1
        // Predicated region
        $region41: #{tpu_custom_call.1} parent=39 // pred_check
          %p218 = pneg %p63
        $region42: #{tpu_custom_call.1} parent=39 // pred_check_branch
          %220 = sbr.rel (%p218) target = $region44
        $region43: #{tpu_custom_call.1} parent=39 // pred_region
          %221 = dma.done [#allocation3], 12800
        $region44: #{tpu_custom_call.1} parent=39 // pred_fallthru
          _
        // Predicated region
        $region45: #{tpu_custom_call.1} parent=39 // pred_check
          %p222 = pneg %p84
        $region46: #{tpu_custom_call.1} parent=39 // pred_check_branch
          %224 = sbr.rel (%p222) target = $region48
        $region47: #{tpu_custom_call.1} parent=39 // pred_region
          %225 = dma.done [#allocation6], 2048
        $region48: #{tpu_custom_call.1} parent=39 // pred_fallthru
          _
        %p226 = scmp.lt.s32.totalorder %s21, 1
        %s227 = scalar_select %p226, %s21, 1
        %s228 = smul.addr %s227, 3
        %s229 = smul.addr %s228, 8
        %s230 = scalar_lea.vmem %s0, %s229
        %p231 = pneg %p42
        %p232 = pneg %p39
        %p233 = pneg %p63
        %p234 = pneg %p60
        %p235 = pneg %p84
        %p236 = pneg %p81
        %p237 = pneg %p105
        %p238 = pneg %p102
        %p239 = pneg %p126
        %p240 = pneg %p123
        %p241 = pneg %p152
        %p242 = pneg %p149
        %s243 = sand.u32 %s139, 1
        %s244 = scalar_lea.sflag [#allocation4], %s243
        %s245 = sand.u32 %s139, 1
        %s246 = smul.addr %s245, 16
        %s247 = scalar_lea.vmem [#allocation7], %s246
        %p248 = scmp.lt.s32.totalorder %s21, 1
        %s249 = scalar_select %p248, %s21, 1
        %s250 = smul.addr %s249, 3
        %s251 = smul.addr %s250, 8
        %s252 = scalar_lea.vmem %s0, %s251
        %v254 = vld [vmem:[%s252] sm:$0xff]
        %v255 = vld [vmem:[%s252 + $0x8] sm:$0xff]
        %v256 = vld [vmem:[%s252 + $0x10] sm:$0xf]
        %v257 = vpack.c.bf16 %v255, %v254
        %v258 = vld [vmem:[#allocation2] sm:$0xff]
        %v259 = vld [vmem:[#allocation2 + $0x8] sm:$0xff]
        %v260 = vld [vmem:[#allocation2 + $0x10] sm:$0xff]
        %v261 = vld [vmem:[#allocation2 + $0x18] sm:$0xff]
        %v262 = vld [vmem:[#allocation2 + $0x20] sm:$0xff]
        %v263 = vld [vmem:[#allocation2 + $0x28] sm:$0xff]
        %v264 = vld [vmem:[#allocation2 + $0x30] sm:$0xff]
        %v265 = vld [vmem:[#allocation2 + $0x38] sm:$0xff]
        %v266 = vld [vmem:[#allocation2 + $0x40] sm:$0xff]
        %v267 = vld [vmem:[#allocation2 + $0x48] sm:$0xff]
        %v268 = vld [vmem:[#allocation2 + $0x50] sm:$0xff]
        %v269 = vld [vmem:[#allocation2 + $0x58] sm:$0xff]
        %v270 = vld [vmem:[#allocation2 + $0x60] sm:$0xff]
        %v271 = vld [vmem:[#allocation2 + $0x68] sm:$0xff]
        %v272 = vld [vmem:[#allocation2 + $0x70] sm:$0xff]
        %v273 = vld [vmem:[#allocation2 + $0x78] sm:$0xff]
        %v274 = vld [vmem:[#allocation2 + $0x80] sm:$0xff]
        %v275 = vld [vmem:[#allocation2 + $0x88] sm:$0xff]
        %v276 = vld [vmem:[#allocation2 + $0x90] sm:$0xff]
        %v277 = vld [vmem:[#allocation2 + $0x98] sm:$0xff]
        %v278 = vpack.c.bf16 %v256, %v256
        %s279 = scalar_lea.vmem [#allocation2], 160
        %v280 = vld [vmem:[%s279] sm:$0xff]
        %v281 = vld [vmem:[%s279 + $0x8] sm:$0xff]
        %v282 = vld [vmem:[%s279 + $0x10] sm:$0xff]
        %v283 = vld [vmem:[%s279 + $0x18] sm:$0xff]
        %v284 = vld [vmem:[%s279 + $0x20] sm:$0xff]
        %v285 = vld [vmem:[%s279 + $0x28] sm:$0xff]
        %v286 = vld [vmem:[%s279 + $0x30] sm:$0xff]
        %v287 = vld [vmem:[%s279 + $0x38] sm:$0xff]
        %v288 = vld [vmem:[%s279 + $0x40] sm:$0xff]
        %v289 = vld [vmem:[%s279 + $0x48] sm:$0xff]
        %v290 = vld [vmem:[%s279 + $0x50] sm:$0xff]
        %v291 = vld [vmem:[%s279 + $0x58] sm:$0xff]
        %v292 = vld [vmem:[%s279 + $0x60] sm:$0xff]
        %v293 = vld [vmem:[%s279 + $0x68] sm:$0xff]
        %v294 = vld [vmem:[%s279 + $0x70] sm:$0xff]
        %v295 = vld [vmem:[%s279 + $0x78] sm:$0xff]
        %v296 = vld [vmem:[%s279 + $0x80] sm:$0xff]
        %v297 = vld [vmem:[%s279 + $0x88] sm:$0xff]
        %v298 = vld [vmem:[%s279 + $0x90] sm:$0xff]
        %v299 = vld [vmem:[%s279 + $0x98] sm:$0xff]
        %vm300 = vsmask.f32 7424
        %v302 = vshrl.u32 %v257, 16
        %v304 = vshll.u32 %v257, 16
        %v306 = vrot.slane %v304, 1
        %v307 = vor.u32 %v302, %v306
        %v309 = vshll.u32 %v278, 16
        %v311 = vrot.slane %v309, 1
        %v312 = vsel %vm300, %v307, %v311
        %v333 = vunpack.c.l.b16 %v280
        %v334 = vunpack.c.h.b16 %v280
        %v335 = vunpack.c.l.b16 %v281
        %v336 = vunpack.c.h.b16 %v281
        %v337 = vunpack.c.l.b16 %v282
        %v338 = vunpack.c.h.b16 %v282
        %v339 = vunpack.c.l.b16 %v283
        %v340 = vunpack.c.h.b16 %v283
        %v341 = vunpack.c.l.b16 %v284
        %v342 = vunpack.c.h.b16 %v284
        %v343 = vunpack.c.l.b16 %v285
        %v344 = vunpack.c.h.b16 %v285
        %v345 = vunpack.c.l.b16 %v286
        %v346 = vunpack.c.h.b16 %v286
        %v347 = vunpack.c.l.b16 %v287
        %v348 = vunpack.c.h.b16 %v287
        %v349 = vunpack.c.l.b16 %v288
        %v350 = vunpack.c.h.b16 %v288
        %v351 = vunpack.c.l.b16 %v289
        %v352 = vunpack.c.h.b16 %v289
        %v353 = vunpack.c.l.b16 %v290
        %v354 = vunpack.c.h.b16 %v290
        %v355 = vunpack.c.l.b16 %v291
        %v356 = vunpack.c.h.b16 %v291
        %v357 = vunpack.c.l.b16 %v292
        %v358 = vunpack.c.h.b16 %v292
        %v359 = vunpack.c.l.b16 %v293
        %v360 = vunpack.c.h.b16 %v293
        %v361 = vunpack.c.l.b16 %v294
        %v362 = vunpack.c.h.b16 %v294
        %v363 = vunpack.c.l.b16 %v295
        %v364 = vunpack.c.h.b16 %v295
        %v365 = vunpack.c.l.b16 %v296
        %v366 = vunpack.c.h.b16 %v296
        %v367 = vunpack.c.l.b16 %v297
        %v368 = vunpack.c.h.b16 %v297
        %v369 = vunpack.c.l.b16 %v298
        %v370 = vunpack.c.h.b16 %v298
        %v371 = vunpack.c.l.b16 %v299
        %v372 = vunpack.c.h.b16 %v299
        %v373 = vpack.c.b16 %v337, %v333
        %v374 = vpack.c.b16 %v338, %v334
        %v375 = vpack.c.b16 %v339, %v335
        %v376 = vpack.c.b16 %v340, %v336
        %v377 = vpack.c.b16 %v345, %v341
        %v378 = vpack.c.b16 %v346, %v342
        %v379 = vpack.c.b16 %v347, %v343
        %v380 = vpack.c.b16 %v348, %v344
        %v381 = vpack.c.b16 %v353, %v349
        %v382 = vpack.c.b16 %v354, %v350
        %v383 = vpack.c.b16 %v355, %v351
        %v384 = vpack.c.b16 %v356, %v352
        %v385 = vpack.c.b16 %v361, %v357
        %v386 = vpack.c.b16 %v362, %v358
        %v387 = vpack.c.b16 %v363, %v359
        %v388 = vpack.c.b16 %v364, %v360
        %v389 = vpack.c.b16 %v369, %v365
        %v390 = vpack.c.b16 %v370, %v366
        %v391 = vpack.c.b16 %v371, %v367
        %v392 = vpack.c.b16 %v372, %v368
        %vm413 = vcmask 654336
        %v415 = vsel %vm413, %v312, 0
        %417 = vmatprep.subr.bf16.mxu0 0
        %418 = vmatpush1.bf16.msra.mxu0 0
        %419 = vmatprep.subr.bf16.mxu0 0
        %420 = vmatpush1.bf16.msra.mxu0 0
        %421 = vmatprep.subr.bf16.mxu0 0
        %422 = vmatpush1.bf16.msra.mxu0 0
        %423 = vmatprep.subr.bf16.mxu0 %v390
        %424 = vmatpush1.bf16.msra.mxu0 %v389
        %425 = vmatprep.subr.bf16.mxu0 %v386
        %426 = vmatpush1.bf16.msra.mxu0 %v385
        %427 = vmatprep.subr.bf16.mxu0 %v382
        %428 = vmatpush1.bf16.msra.mxu0 %v381
        %429 = vmatprep.subr.bf16.mxu0 %v378
        %430 = vmatpush1.bf16.msra.mxu0 %v377
        %431 = vmatprep.subr.bf16.mxu0 %v374
        %432 = vmatpush1.bf16.msra.mxu0 %v373
        %433 = vmatprep.subr.bf16.mxu0 0
        %434 = vmatpush2.bf16.msra.mxu0 0
        %435 = vmatprep.subr.bf16.mxu0 0
        %436 = vmatpush2.bf16.msra.mxu0 0
        %437 = vmatprep.subr.bf16.mxu0 0
        %438 = vmatpush2.bf16.msra.mxu0 0
        %439 = vmatprep.subr.bf16.mxu0 0
        %440 = vmatpush2.bf16.msra.mxu0 0
        %441 = vmatprep.subr.bf16.mxu0 0
        %442 = vmatpush2.bf16.msra.mxu0 0
        %443 = vmatprep.subr.bf16.mxu0 0
        %444 = vmatpush2.bf16.msra.mxu0 0
        %445 = vmatprep.subr.bf16.mxu0 0
        %446 = vmatpush2.bf16.msra.mxu0 0
        %447 = vmatprep.subr.bf16.mxu0 0
        %448 = vmatpush2.bf16.msra.mxu0 0
        %449 = vmatprep.mubr.bf16.mxu0 0
        %450 = vmatmul.mubr.bf16.gmra.mxu0 %v415
        %v451 = vpop.f32.mrf.mxu0
        %v452 = vadd.f32 0.0, %v451
        %v453 = vpop.f32.mrf.mxu0
        %v454 = vadd.f32 0.0, %v453
        %v455 = vpop.f32.mrf.mxu0
        %v456 = vadd.f32 0.0, %v455
        %v457 = vpop.f32.mrf.mxu0
        %v458 = vadd.f32 0.0, %v457
        %459 = vdwg.mxu0
        %460 = vmatprep.subr.bf16.mxu0 0
        %461 = vmatpush1.bf16.msra.mxu0 0
        %462 = vmatprep.subr.bf16.mxu0 0
        %463 = vmatpush1.bf16.msra.mxu0 0
        %464 = vmatprep.subr.bf16.mxu0 0
        %465 = vmatpush1.bf16.msra.mxu0 0
        %466 = vmatprep.subr.bf16.mxu0 %v392
        %467 = vmatpush1.bf16.msra.mxu0 %v391
        %468 = vmatprep.subr.bf16.mxu0 %v388
        %469 = vmatpush1.bf16.msra.mxu0 %v387
        %470 = vmatprep.subr.bf16.mxu0 %v384
        %471 = vmatpush1.bf16.msra.mxu0 %v383
        %472 = vmatprep.subr.bf16.mxu0 %v380
        %473 = vmatpush1.bf16.msra.mxu0 %v379
        %474 = vmatprep.subr.bf16.mxu0 %v376
        %475 = vmatpush1.bf16.msra.mxu0 %v375
        %476 = vmatprep.subr.bf16.mxu0 0
        %477 = vmatpush2.bf16.msra.mxu0 0
        %478 = vmatprep.subr.bf16.mxu0 0
        %479 = vmatpush2.bf16.msra.mxu0 0
        %480 = vmatprep.subr.bf16.mxu0 0
        %481 = vmatpush2.bf16.msra.mxu0 0
        %482 = vmatprep.subr.bf16.mxu0 0
        %483 = vmatpush2.bf16.msra.mxu0 0
        %484 = vmatprep.subr.bf16.mxu0 0
        %485 = vmatpush2.bf16.msra.mxu0 0
        %486 = vmatprep.subr.bf16.mxu0 0
        %487 = vmatpush2.bf16.msra.mxu0 0
        %488 = vmatprep.subr.bf16.mxu0 0
        %489 = vmatpush2.bf16.msra.mxu0 0
        %490 = vmatprep.subr.bf16.mxu0 0
        %491 = vmatpush2.bf16.msra.mxu0 0
        %492 = vmatprep.mubr.bf16.mxu0 0
        %493 = vmatmul.mubr.bf16.gmra.mxu0 %v415
        %v494 = vpop.f32.mrf.mxu0
        %v495 = vadd.f32 0.0, %v494
        %v496 = vpop.f32.mrf.mxu0
        %v497 = vadd.f32 0.0, %v496
        %v498 = vpop.f32.mrf.mxu0
        %v499 = vadd.f32 0.0, %v498
        %v500 = vpop.f32.mrf.mxu0
        %v501 = vadd.f32 0.0, %v500
        %502 = vdwg.mxu0
        %v523 = vunpack.c.l.b16 %v258
        %v524 = vunpack.c.h.b16 %v258
        %v525 = vunpack.c.l.b16 %v259
        %v526 = vunpack.c.h.b16 %v259
        %v527 = vunpack.c.l.b16 %v260
        %v528 = vunpack.c.h.b16 %v260
        %v529 = vunpack.c.l.b16 %v261
        %v530 = vunpack.c.h.b16 %v261
        %v531 = vunpack.c.l.b16 %v262
        %v532 = vunpack.c.h.b16 %v262
        %v533 = vunpack.c.l.b16 %v263
        %v534 = vunpack.c.h.b16 %v263
        %v535 = vunpack.c.l.b16 %v264
        %v536 = vunpack.c.h.b16 %v264
        %v537 = vunpack.c.l.b16 %v265
        %v538 = vunpack.c.h.b16 %v265
        %v539 = vunpack.c.l.b16 %v266
        %v540 = vunpack.c.h.b16 %v266
        %v541 = vunpack.c.l.b16 %v267
        %v542 = vunpack.c.h.b16 %v267
        %v543 = vunpack.c.l.b16 %v268
        %v544 = vunpack.c.h.b16 %v268
        %v545 = vunpack.c.l.b16 %v269
        %v546 = vunpack.c.h.b16 %v269
        %v547 = vunpack.c.l.b16 %v270
        %v548 = vunpack.c.h.b16 %v270
        %v549 = vunpack.c.l.b16 %v271
        %v550 = vunpack.c.h.b16 %v271
        %v551 = vunpack.c.l.b16 %v272
        %v552 = vunpack.c.h.b16 %v272
        %v553 = vunpack.c.l.b16 %v273
        %v554 = vunpack.c.h.b16 %v273
        %v555 = vunpack.c.l.b16 %v274
        %v556 = vunpack.c.h.b16 %v274
        %v557 = vunpack.c.l.b16 %v275
        %v558 = vunpack.c.h.b16 %v275
        %v559 = vunpack.c.l.b16 %v276
        %v560 = vunpack.c.h.b16 %v276
        %v561 = vunpack.c.l.b16 %v277
        %v562 = vunpack.c.h.b16 %v277
        %v563 = vpack.c.b16 %v527, %v523
        %v564 = vpack.c.b16 %v528, %v524
        %v565 = vpack.c.b16 %v529, %v525
        %v566 = vpack.c.b16 %v530, %v526
        %v567 = vpack.c.b16 %v535, %v531
        %v568 = vpack.c.b16 %v536, %v532
        %v569 = vpack.c.b16 %v537, %v533
        %v570 = vpack.c.b16 %v538, %v534
        %v571 = vpack.c.b16 %v543, %v539
        %v572 = vpack.c.b16 %v544, %v540
        %v573 = vpack.c.b16 %v545, %v541
        %v574 = vpack.c.b16 %v546, %v542
        %v575 = vpack.c.b16 %v551, %v547
        %v576 = vpack.c.b16 %v552, %v548
        %v577 = vpack.c.b16 %v553, %v549
        %v578 = vpack.c.b16 %v554, %v550
        %v579 = vpack.c.b16 %v559, %v555
        %v580 = vpack.c.b16 %v560, %v556
        %v581 = vpack.c.b16 %v561, %v557
        %v582 = vpack.c.b16 %v562, %v558
        %v603 = vsel %vm413, %v257, 0
        %605 = vmatprep.subr.bf16.mxu0 0
        %606 = vmatpush1.bf16.msra.mxu0 0
        %607 = vmatprep.subr.bf16.mxu0 0
        %608 = vmatpush1.bf16.msra.mxu0 0
        %609 = vmatprep.subr.bf16.mxu0 0
        %610 = vmatpush1.bf16.msra.mxu0 0
        %611 = vmatprep.subr.bf16.mxu0 %v580
        %612 = vmatpush1.bf16.msra.mxu0 %v579
        %613 = vmatprep.subr.bf16.mxu0 %v576
        %614 = vmatpush1.bf16.msra.mxu0 %v575
        %615 = vmatprep.subr.bf16.mxu0 %v572
        %616 = vmatpush1.bf16.msra.mxu0 %v571
        %617 = vmatprep.subr.bf16.mxu0 %v568
        %618 = vmatpush1.bf16.msra.mxu0 %v567
        %619 = vmatprep.subr.bf16.mxu0 %v564
        %620 = vmatpush1.bf16.msra.mxu0 %v563
        %621 = vmatprep.subr.bf16.mxu0 0
        %622 = vmatpush2.bf16.msra.mxu0 0
        %623 = vmatprep.subr.bf16.mxu0 0
        %624 = vmatpush2.bf16.msra.mxu0 0
        %625 = vmatprep.subr.bf16.mxu0 0
        %626 = vmatpush2.bf16.msra.mxu0 0
        %627 = vmatprep.subr.bf16.mxu0 0
        %628 = vmatpush2.bf16.msra.mxu0 0
        %629 = vmatprep.subr.bf16.mxu0 0
        %630 = vmatpush2.bf16.msra.mxu0 0
        %631 = vmatprep.subr.bf16.mxu0 0
        %632 = vmatpush2.bf16.msra.mxu0 0
        %633 = vmatprep.subr.bf16.mxu0 0
        %634 = vmatpush2.bf16.msra.mxu0 0
        %635 = vmatprep.subr.bf16.mxu0 0
        %636 = vmatpush2.bf16.msra.mxu0 0
        %637 = vmatprep.mubr.bf16.mxu0 0
        %638 = vmatmul.mubr.bf16.gmra.mxu0 %v603
        %v639 = vpop.f32.mrf.mxu0
        %v640 = vadd.f32 %v452, %v639
        %v641 = vpop.f32.mrf.mxu0
        %v642 = vadd.f32 %v454, %v641
        %v643 = vpop.f32.mrf.mxu0
        %v644 = vadd.f32 %v456, %v643
        %v645 = vpop.f32.mrf.mxu0
        %v646 = vadd.f32 %v458, %v645
        %647 = vdwg.mxu0
        %648 = vmatprep.subr.bf16.mxu0 0
        %649 = vmatpush1.bf16.msra.mxu0 0
        %650 = vmatprep.subr.bf16.mxu0 0
        %651 = vmatpush1.bf16.msra.mxu0 0
        %652 = vmatprep.subr.bf16.mxu0 0
        %653 = vmatpush1.bf16.msra.mxu0 0
        %654 = vmatprep.subr.bf16.mxu0 %v582
        %655 = vmatpush1.bf16.msra.mxu0 %v581
        %656 = vmatprep.subr.bf16.mxu0 %v578
        %657 = vmatpush1.bf16.msra.mxu0 %v577
        %658 = vmatprep.subr.bf16.mxu0 %v574
        %659 = vmatpush1.bf16.msra.mxu0 %v573
        %660 = vmatprep.subr.bf16.mxu0 %v570
        %661 = vmatpush1.bf16.msra.mxu0 %v569
        %662 = vmatprep.subr.bf16.mxu0 %v566
        %663 = vmatpush1.bf16.msra.mxu0 %v565
        %664 = vmatprep.subr.bf16.mxu0 0
        %665 = vmatpush2.bf16.msra.mxu0 0
        %666 = vmatprep.subr.bf16.mxu0 0
        %667 = vmatpush2.bf16.msra.mxu0 0
        %668 = vmatprep.subr.bf16.mxu0 0
        %669 = vmatpush2.bf16.msra.mxu0 0
        %670 = vmatprep.subr.bf16.mxu0 0
        %671 = vmatpush2.bf16.msra.mxu0 0
        %672 = vmatprep.subr.bf16.mxu0 0
        %673 = vmatpush2.bf16.msra.mxu0 0
        %674 = vmatprep.subr.bf16.mxu0 0
        %675 = vmatpush2.bf16.msra.mxu0 0
        %676 = vmatprep.subr.bf16.mxu0 0
        %677 = vmatpush2.bf16.msra.mxu0 0
        %678 = vmatprep.subr.bf16.mxu0 0
        %679 = vmatpush2.bf16.msra.mxu0 0
        %680 = vmatprep.mubr.bf16.mxu0 0
        %681 = vmatmul.mubr.bf16.gmra.mxu0 %v603
        %v682 = vpop.f32.mrf.mxu0
        %v683 = vadd.f32 %v495, %v682
        %v684 = vpop.f32.mrf.mxu0
        %v685 = vadd.f32 %v497, %v684
        %v686 = vpop.f32.mrf.mxu0
        %v687 = vadd.f32 %v499, %v686
        %v688 = vpop.f32.mrf.mxu0
        %v689 = vadd.f32 %v501, %v688
        %690 = vdwg.mxu0
        %s691 = scalar_lea.vmem [#allocation2], 320
        %v692 = vld [vmem:[%s691] sm:$0xff]
        %v693 = vld [vmem:[%s691 + $0x8] sm:$0xff]
        %v694 = vld [vmem:[%s691 + $0x10] sm:$0xff]
        %v695 = vld [vmem:[%s691 + $0x18] sm:$0xff]
        %v696 = vld [vmem:[%s691 + $0x20] sm:$0xff]
        %v697 = vld [vmem:[%s691 + $0x28] sm:$0xff]
        %v698 = vld [vmem:[%s691 + $0x30] sm:$0xff]
        %v699 = vld [vmem:[%s691 + $0x38] sm:$0xff]
        %v700 = vld [vmem:[%s691 + $0x40] sm:$0xff]
        %v701 = vld [vmem:[%s691 + $0x48] sm:$0xff]
        %v702 = vld [vmem:[%s691 + $0x50] sm:$0xff]
        %v703 = vld [vmem:[%s691 + $0x58] sm:$0xff]
        %v704 = vld [vmem:[%s691 + $0x60] sm:$0xff]
        %v705 = vld [vmem:[%s691 + $0x68] sm:$0xff]
        %v706 = vld [vmem:[%s691 + $0x70] sm:$0xff]
        %v707 = vld [vmem:[%s691 + $0x78] sm:$0xff]
        %v708 = vld [vmem:[%s691 + $0x80] sm:$0xff]
        %v709 = vld [vmem:[%s691 + $0x88] sm:$0xff]
        %v710 = vld [vmem:[%s691 + $0x90] sm:$0xff]
        %v711 = vld [vmem:[%s691 + $0x98] sm:$0xff]
        %vm714 = vcmask 1046528
        %v715 = vrot.slane %v257, 1
        %v716 = vrot.slane %v278, 1
        %v717 = vsel %vm714, %v715, %v716
        %v738 = vunpack.c.l.b16 %v692
        %v739 = vunpack.c.h.b16 %v692
        %v740 = vunpack.c.l.b16 %v693
        %v741 = vunpack.c.h.b16 %v693
        %v742 = vunpack.c.l.b16 %v694
        %v743 = vunpack.c.h.b16 %v694
        %v744 = vunpack.c.l.b16 %v695
        %v745 = vunpack.c.h.b16 %v695
        %v746 = vunpack.c.l.b16 %v696
        %v747 = vunpack.c.h.b16 %v696
        %v748 = vunpack.c.l.b16 %v697
        %v749 = vunpack.c.h.b16 %v697
        %v750 = vunpack.c.l.b16 %v698
        %v751 = vunpack.c.h.b16 %v698
        %v752 = vunpack.c.l.b16 %v699
        %v753 = vunpack.c.h.b16 %v699
        %v754 = vunpack.c.l.b16 %v700
        %v755 = vunpack.c.h.b16 %v700
        %v756 = vunpack.c.l.b16 %v701
        %v757 = vunpack.c.h.b16 %v701
        %v758 = vunpack.c.l.b16 %v702
        %v759 = vunpack.c.h.b16 %v702
        %v760 = vunpack.c.l.b16 %v703
        %v761 = vunpack.c.h.b16 %v703
        %v762 = vunpack.c.l.b16 %v704
        %v763 = vunpack.c.h.b16 %v704
        %v764 = vunpack.c.l.b16 %v705
        %v765 = vunpack.c.h.b16 %v705
        %v766 = vunpack.c.l.b16 %v706
        %v767 = vunpack.c.h.b16 %v706
        %v768 = vunpack.c.l.b16 %v707
        %v769 = vunpack.c.h.b16 %v707
        %v770 = vunpack.c.l.b16 %v708
        %v771 = vunpack.c.h.b16 %v708
        %v772 = vunpack.c.l.b16 %v709
        %v773 = vunpack.c.h.b16 %v709
        %v774 = vunpack.c.l.b16 %v710
        %v775 = vunpack.c.h.b16 %v710
        %v776 = vunpack.c.l.b16 %v711
        %v777 = vunpack.c.h.b16 %v711
        %v778 = vpack.c.b16 %v742, %v738
        %v779 = vpack.c.b16 %v743, %v739
        %v780 = vpack.c.b16 %v744, %v740
        %v781 = vpack.c.b16 %v745, %v741
        %v782 = vpack.c.b16 %v750, %v746
        %v783 = vpack.c.b16 %v751, %v747
        %v784 = vpack.c.b16 %v752, %v748
        %v785 = vpack.c.b16 %v753, %v749
        %v786 = vpack.c.b16 %v758, %v754
        %v787 = vpack.c.b16 %v759, %v755
        %v788 = vpack.c.b16 %v760, %v756
        %v789 = vpack.c.b16 %v761, %v757
        %v790 = vpack.c.b16 %v766, %v762
        %v791 = vpack.c.b16 %v767, %v763
        %v792 = vpack.c.b16 %v768, %v764
        %v793 = vpack.c.b16 %v769, %v765
        %v794 = vpack.c.b16 %v774, %v770
        %v795 = vpack.c.b16 %v775, %v771
        %v796 = vpack.c.b16 %v776, %v772
        %v797 = vpack.c.b16 %v777, %v773
        %v819 = vsel %vm413, %v717, 0
        %821 = vmatprep.subr.bf16.mxu0 0
        %822 = vmatpush1.bf16.msra.mxu0 0
        %823 = vmatprep.subr.bf16.mxu0 0
        %824 = vmatpush1.bf16.msra.mxu0 0
        %825 = vmatprep.subr.bf16.mxu0 0
        %826 = vmatpush1.bf16.msra.mxu0 0
        %827 = vmatprep.subr.bf16.mxu0 %v795
        %828 = vmatpush1.bf16.msra.mxu0 %v794
        %829 = vmatprep.subr.bf16.mxu0 %v791
        %830 = vmatpush1.bf16.msra.mxu0 %v790
        %831 = vmatprep.subr.bf16.mxu0 %v787
        %832 = vmatpush1.bf16.msra.mxu0 %v786
        %833 = vmatprep.subr.bf16.mxu0 %v783
        %834 = vmatpush1.bf16.msra.mxu0 %v782
        %835 = vmatprep.subr.bf16.mxu0 %v779
        %836 = vmatpush1.bf16.msra.mxu0 %v778
        %837 = vmatprep.subr.bf16.mxu0 0
        %838 = vmatpush2.bf16.msra.mxu0 0
        %839 = vmatprep.subr.bf16.mxu0 0
        %840 = vmatpush2.bf16.msra.mxu0 0
        %841 = vmatprep.subr.bf16.mxu0 0
        %842 = vmatpush2.bf16.msra.mxu0 0
        %843 = vmatprep.subr.bf16.mxu0 0
        %844 = vmatpush2.bf16.msra.mxu0 0
        %845 = vmatprep.subr.bf16.mxu0 0
        %846 = vmatpush2.bf16.msra.mxu0 0
        %847 = vmatprep.subr.bf16.mxu0 0
        %848 = vmatpush2.bf16.msra.mxu0 0
        %849 = vmatprep.subr.bf16.mxu0 0
        %850 = vmatpush2.bf16.msra.mxu0 0
        %851 = vmatprep.subr.bf16.mxu0 0
        %852 = vmatpush2.bf16.msra.mxu0 0
        %853 = vmatprep.mubr.bf16.mxu0 0
        %854 = vmatmul.mubr.bf16.gmra.mxu0 %v819
        %v855 = vpop.f32.mrf.mxu0
        %v856 = vadd.f32 0.0, %v855
        %v857 = vpop.f32.mrf.mxu0
        %v858 = vadd.f32 0.0, %v857
        %v859 = vpop.f32.mrf.mxu0
        %v860 = vadd.f32 0.0, %v859
        %v861 = vpop.f32.mrf.mxu0
        %v862 = vadd.f32 0.0, %v861
        %863 = vdwg.mxu0
        %864 = vmatprep.subr.bf16.mxu0 0
        %865 = vmatpush1.bf16.msra.mxu0 0
        %866 = vmatprep.subr.bf16.mxu0 0
        %867 = vmatpush1.bf16.msra.mxu0 0
        %868 = vmatprep.subr.bf16.mxu0 0
        %869 = vmatpush1.bf16.msra.mxu0 0
        %870 = vmatprep.subr.bf16.mxu0 %v797
        %871 = vmatpush1.bf16.msra.mxu0 %v796
        %872 = vmatprep.subr.bf16.mxu0 %v793
        %873 = vmatpush1.bf16.msra.mxu0 %v792
        %874 = vmatprep.subr.bf16.mxu0 %v789
        %875 = vmatpush1.bf16.msra.mxu0 %v788
        %876 = vmatprep.subr.bf16.mxu0 %v785
        %877 = vmatpush1.bf16.msra.mxu0 %v784
        %878 = vmatprep.subr.bf16.mxu0 %v781
        %879 = vmatpush1.bf16.msra.mxu0 %v780
        %880 = vmatprep.subr.bf16.mxu0 0
        %881 = vmatpush2.bf16.msra.mxu0 0
        %882 = vmatprep.subr.bf16.mxu0 0
        %883 = vmatpush2.bf16.msra.mxu0 0
        %884 = vmatprep.subr.bf16.mxu0 0
        %885 = vmatpush2.bf16.msra.mxu0 0
        %886 = vmatprep.subr.bf16.mxu0 0
        %887 = vmatpush2.bf16.msra.mxu0 0
        %888 = vmatprep.subr.bf16.mxu0 0
        %889 = vmatpush2.bf16.msra.mxu0 0
        %890 = vmatprep.subr.bf16.mxu0 0
        %891 = vmatpush2.bf16.msra.mxu0 0
        %892 = vmatprep.subr.bf16.mxu0 0
        %893 = vmatpush2.bf16.msra.mxu0 0
        %894 = vmatprep.subr.bf16.mxu0 0
        %895 = vmatpush2.bf16.msra.mxu0 0
        %896 = vmatprep.mubr.bf16.mxu0 0
        %897 = vmatmul.mubr.bf16.gmra.mxu0 %v819
        %v898 = vpop.f32.mrf.mxu0
        %v899 = vadd.f32 0.0, %v898
        %v900 = vpop.f32.mrf.mxu0
        %v901 = vadd.f32 0.0, %v900
        %v902 = vpop.f32.mrf.mxu0
        %v903 = vadd.f32 0.0, %v902
        %v904 = vpop.f32.mrf.mxu0
        %v905 = vadd.f32 0.0, %v904
        %906 = vdwg.mxu0
        %v907 = vadd.f32 %v640, %v856
        %v908 = vadd.f32 %v642, %v858
        %v909 = vadd.f32 %v683, %v899
        %v910 = vadd.f32 %v685, %v901
        %v911 = vadd.f32 %v644, %v860
        %v912 = vadd.f32 %v646, %v862
        %v913 = vadd.f32 %v687, %v903
        %v914 = vadd.f32 %v689, %v905
        %s915 = scalar_lea.vmem [#allocation2], 480
        %v916 = vld [vmem:[%s915] sm:$0xff]
        %v917 = vld [vmem:[%s915 + $0x8] sm:$0xff]
        %v918 = vld [vmem:[%s915 + $0x10] sm:$0xff]
        %v919 = vld [vmem:[%s915 + $0x18] sm:$0xff]
        %v920 = vld [vmem:[%s915 + $0x20] sm:$0xff]
        %v921 = vld [vmem:[%s915 + $0x28] sm:$0xff]
        %v922 = vld [vmem:[%s915 + $0x30] sm:$0xff]
        %v923 = vld [vmem:[%s915 + $0x38] sm:$0xff]
        %v924 = vld [vmem:[%s915 + $0x40] sm:$0xff]
        %v925 = vld [vmem:[%s915 + $0x48] sm:$0xff]
        %v926 = vld [vmem:[%s915 + $0x50] sm:$0xff]
        %v927 = vld [vmem:[%s915 + $0x58] sm:$0xff]
        %v928 = vld [vmem:[%s915 + $0x60] sm:$0xff]
        %v929 = vld [vmem:[%s915 + $0x68] sm:$0xff]
        %v930 = vld [vmem:[%s915 + $0x70] sm:$0xff]
        %v931 = vld [vmem:[%s915 + $0x78] sm:$0xff]
        %v932 = vld [vmem:[%s915 + $0x80] sm:$0xff]
        %v933 = vld [vmem:[%s915 + $0x88] sm:$0xff]
        %v934 = vld [vmem:[%s915 + $0x90] sm:$0xff]
        %v935 = vld [vmem:[%s915 + $0x98] sm:$0xff]
        %vm936 = vsmask.f32 6400
        %v937 = vrot.slane %v302, 1
        %v938 = vrot.slane %v304, 2
        %v939 = vor.u32 %v937, %v938
        %v940 = vshrl.u32 %v278, 16
        %v942 = vrot.slane %v940, 1
        %v943 = vrot.slane %v309, 2
        %v944 = vor.u32 %v942, %v943
        %v945 = vsel %vm936, %v939, %v944
        %v966 = vunpack.c.l.b16 %v916
        %v967 = vunpack.c.h.b16 %v916
        %v968 = vunpack.c.l.b16 %v917
        %v969 = vunpack.c.h.b16 %v917
        %v970 = vunpack.c.l.b16 %v918
        %v971 = vunpack.c.h.b16 %v918
        %v972 = vunpack.c.l.b16 %v919
        %v973 = vunpack.c.h.b16 %v919
        %v974 = vunpack.c.l.b16 %v920
        %v975 = vunpack.c.h.b16 %v920
        %v976 = vunpack.c.l.b16 %v921
        %v977 = vunpack.c.h.b16 %v921
        %v978 = vunpack.c.l.b16 %v922
        %v979 = vunpack.c.h.b16 %v922
        %v980 = vunpack.c.l.b16 %v923
        %v981 = vunpack.c.h.b16 %v923
        %v982 = vunpack.c.l.b16 %v924
        %v983 = vunpack.c.h.b16 %v924
        %v984 = vunpack.c.l.b16 %v925
        %v985 = vunpack.c.h.b16 %v925
        %v986 = vunpack.c.l.b16 %v926
        %v987 = vunpack.c.h.b16 %v926
        %v988 = vunpack.c.l.b16 %v927
        %v989 = vunpack.c.h.b16 %v927
        %v990 = vunpack.c.l.b16 %v928
        %v991 = vunpack.c.h.b16 %v928
        %v992 = vunpack.c.l.b16 %v929
        %v993 = vunpack.c.h.b16 %v929
        %v994 = vunpack.c.l.b16 %v930
        %v995 = vunpack.c.h.b16 %v930
        %v996 = vunpack.c.l.b16 %v931
        %v997 = vunpack.c.h.b16 %v931
        %v998 = vunpack.c.l.b16 %v932
        %v999 = vunpack.c.h.b16 %v932
        %v1000 = vunpack.c.l.b16 %v933
        %v1001 = vunpack.c.h.b16 %v933
        %v1002 = vunpack.c.l.b16 %v934
        %v1003 = vunpack.c.h.b16 %v934
        %v1004 = vunpack.c.l.b16 %v935
        %v1005 = vunpack.c.h.b16 %v935
        %v1006 = vpack.c.b16 %v970, %v966
        %v1007 = vpack.c.b16 %v971, %v967
        %v1008 = vpack.c.b16 %v972, %v968
        %v1009 = vpack.c.b16 %v973, %v969
        %v1010 = vpack.c.b16 %v978, %v974
        %v1011 = vpack.c.b16 %v979, %v975
        %v1012 = vpack.c.b16 %v980, %v976
        %v1013 = vpack.c.b16 %v981, %v977
        %v1014 = vpack.c.b16 %v986, %v982
        %v1015 = vpack.c.b16 %v987, %v983
        %v1016 = vpack.c.b16 %v988, %v984
        %v1017 = vpack.c.b16 %v989, %v985
        %v1018 = vpack.c.b16 %v994, %v990
        %v1019 = vpack.c.b16 %v995, %v991
        %v1020 = vpack.c.b16 %v996, %v992
        %v1021 = vpack.c.b16 %v997, %v993
        %v1022 = vpack.c.b16 %v1002, %v998
        %v1023 = vpack.c.b16 %v1003, %v999
        %v1024 = vpack.c.b16 %v1004, %v1000
        %v1025 = vpack.c.b16 %v1005, %v1001
        %v1047 = vsel %vm413, %v945, 0
        %1049 = vmatprep.subr.bf16.mxu0 0
        %1050 = vmatpush1.bf16.msra.mxu0 0
        %1051 = vmatprep.subr.bf16.mxu0 0
        %1052 = vmatpush1.bf16.msra.mxu0 0
        %1053 = vmatprep.subr.bf16.mxu0 0
        %1054 = vmatpush1.bf16.msra.mxu0 0
        %1055 = vmatprep.subr.bf16.mxu0 %v1023
        %1056 = vmatpush1.bf16.msra.mxu0 %v1022
        %1057 = vmatprep.subr.bf16.mxu0 %v1019
        %1058 = vmatpush1.bf16.msra.mxu0 %v1018
        %1059 = vmatprep.subr.bf16.mxu0 %v1015
        %1060 = vmatpush1.bf16.msra.mxu0 %v1014
        %1061 = vmatprep.subr.bf16.mxu0 %v1011
        %1062 = vmatpush1.bf16.msra.mxu0 %v1010
        %1063 = vmatprep.subr.bf16.mxu0 %v1007
        %1064 = vmatpush1.bf16.msra.mxu0 %v1006
        %1065 = vmatprep.subr.bf16.mxu0 0
        %1066 = vmatpush2.bf16.msra.mxu0 0
        %1067 = vmatprep.subr.bf16.mxu0 0
        %1068 = vmatpush2.bf16.msra.mxu0 0
        %1069 = vmatprep.subr.bf16.mxu0 0
        %1070 = vmatpush2.bf16.msra.mxu0 0
        %1071 = vmatprep.subr.bf16.mxu0 0
        %1072 = vmatpush2.bf16.msra.mxu0 0
        %1073 = vmatprep.subr.bf16.mxu0 0
        %1074 = vmatpush2.bf16.msra.mxu0 0
        %1075 = vmatprep.subr.bf16.mxu0 0
        %1076 = vmatpush2.bf16.msra.mxu0 0
        %1077 = vmatprep.subr.bf16.mxu0 0
        %1078 = vmatpush2.bf16.msra.mxu0 0
        %1079 = vmatprep.subr.bf16.mxu0 0
        %1080 = vmatpush2.bf16.msra.mxu0 0
        %1081 = vmatprep.mubr.bf16.mxu0 0
        %1082 = vmatmul.mubr.bf16.gmra.mxu0 %v1047
        %v1083 = vpop.f32.mrf.mxu0
        %v1084 = vadd.f32 0.0, %v1083
        %v1085 = vpop.f32.mrf.mxu0
        %v1086 = vadd.f32 0.0, %v1085
        %v1087 = vpop.f32.mrf.mxu0
        %v1088 = vadd.f32 0.0, %v1087
        %v1089 = vpop.f32.mrf.mxu0
        %v1090 = vadd.f32 0.0, %v1089
        %1091 = vdwg.mxu0
        %1092 = vmatprep.subr.bf16.mxu0 0
        %1093 = vmatpush1.bf16.msra.mxu0 0
        %1094 = vmatprep.subr.bf16.mxu0 0
        %1095 = vmatpush1.bf16.msra.mxu0 0
        %1096 = vmatprep.subr.bf16.mxu0 0
        %1097 = vmatpush1.bf16.msra.mxu0 0
        %1098 = vmatprep.subr.bf16.mxu0 %v1025
        %1099 = vmatpush1.bf16.msra.mxu0 %v1024
        %1100 = vmatprep.subr.bf16.mxu0 %v1021
        %1101 = vmatpush1.bf16.msra.mxu0 %v1020
        %1102 = vmatprep.subr.bf16.mxu0 %v1017
        %1103 = vmatpush1.bf16.msra.mxu0 %v1016
        %1104 = vmatprep.subr.bf16.mxu0 %v1013
        %1105 = vmatpush1.bf16.msra.mxu0 %v1012
        %1106 = vmatprep.subr.bf16.mxu0 %v1009
        %1107 = vmatpush1.bf16.msra.mxu0 %v1008
        %1108 = vmatprep.subr.bf16.mxu0 0
        %1109 = vmatpush2.bf16.msra.mxu0 0
        %1110 = vmatprep.subr.bf16.mxu0 0
        %1111 = vmatpush2.bf16.msra.mxu0 0
        %1112 = vmatprep.subr.bf16.mxu0 0
        %1113 = vmatpush2.bf16.msra.mxu0 0
        %1114 = vmatprep.subr.bf16.mxu0 0
        %1115 = vmatpush2.bf16.msra.mxu0 0
        %1116 = vmatprep.subr.bf16.mxu0 0
        %1117 = vmatpush2.bf16.msra.mxu0 0
        %1118 = vmatprep.subr.bf16.mxu0 0
        %1119 = vmatpush2.bf16.msra.mxu0 0
        %1120 = vmatprep.subr.bf16.mxu0 0
        %1121 = vmatpush2.bf16.msra.mxu0 0
        %1122 = vmatprep.subr.bf16.mxu0 0
        %1123 = vmatpush2.bf16.msra.mxu0 0
        %1124 = vmatprep.mubr.bf16.mxu0 0
        %1125 = vmatmul.mubr.bf16.gmra.mxu0 %v1047
        %v1126 = vpop.f32.mrf.mxu0
        %v1127 = vadd.f32 0.0, %v1126
        %v1128 = vpop.f32.mrf.mxu0
        %v1129 = vadd.f32 0.0, %v1128
        %v1130 = vpop.f32.mrf.mxu0
        %v1131 = vadd.f32 0.0, %v1130
        %v1132 = vpop.f32.mrf.mxu0
        %v1133 = vadd.f32 0.0, %v1132
        %1134 = vdwg.mxu0
        %v1135 = vadd.f32 %v907, %v1084
        %v1136 = vadd.f32 %v908, %v1086
        %v1137 = vadd.f32 %v909, %v1127
        %v1138 = vadd.f32 %v910, %v1129
        %v1139 = vadd.f32 %v911, %v1088
        %v1140 = vadd.f32 %v912, %v1090
        %v1141 = vadd.f32 %v913, %v1131
        %v1142 = vadd.f32 %v914, %v1133
        %s1143 = scalar_lea.vmem [#allocation2], 640
        %v1144 = vld [vmem:[%s1143] sm:$0xff]
        %v1145 = vld [vmem:[%s1143 + $0x8] sm:$0xff]
        %v1146 = vld [vmem:[%s1143 + $0x10] sm:$0xff]
        %v1147 = vld [vmem:[%s1143 + $0x18] sm:$0xff]
        %v1148 = vld [vmem:[%s1143 + $0x20] sm:$0xff]
        %v1149 = vld [vmem:[%s1143 + $0x28] sm:$0xff]
        %v1150 = vld [vmem:[%s1143 + $0x30] sm:$0xff]
        %v1151 = vld [vmem:[%s1143 + $0x38] sm:$0xff]
        %v1152 = vld [vmem:[%s1143 + $0x40] sm:$0xff]
        %v1153 = vld [vmem:[%s1143 + $0x48] sm:$0xff]
        %v1154 = vld [vmem:[%s1143 + $0x50] sm:$0xff]
        %v1155 = vld [vmem:[%s1143 + $0x58] sm:$0xff]
        %v1156 = vld [vmem:[%s1143 + $0x60] sm:$0xff]
        %v1157 = vld [vmem:[%s1143 + $0x68] sm:$0xff]
        %v1158 = vld [vmem:[%s1143 + $0x70] sm:$0xff]
        %v1159 = vld [vmem:[%s1143 + $0x78] sm:$0xff]
        %v1160 = vld [vmem:[%s1143 + $0x80] sm:$0xff]
        %v1161 = vld [vmem:[%s1143 + $0x88] sm:$0xff]
        %v1162 = vld [vmem:[%s1143 + $0x90] sm:$0xff]
        %v1163 = vld [vmem:[%s1143 + $0x98] sm:$0xff]
        %vm1164 = vcmask 1045504
        %v1165 = vrot.slane %v257, 2
        %v1166 = vrot.slane %v278, 2
        %v1167 = vsel %vm1164, %v1165, %v1166
        %v1188 = vunpack.c.l.b16 %v1144
        %v1189 = vunpack.c.h.b16 %v1144
        %v1190 = vunpack.c.l.b16 %v1145
        %v1191 = vunpack.c.h.b16 %v1145
        %v1192 = vunpack.c.l.b16 %v1146
        %v1193 = vunpack.c.h.b16 %v1146
        %v1194 = vunpack.c.l.b16 %v1147
        %v1195 = vunpack.c.h.b16 %v1147
        %v1196 = vunpack.c.l.b16 %v1148
        %v1197 = vunpack.c.h.b16 %v1148
        %v1198 = vunpack.c.l.b16 %v1149
        %v1199 = vunpack.c.h.b16 %v1149
        %v1200 = vunpack.c.l.b16 %v1150
        %v1201 = vunpack.c.h.b16 %v1150
        %v1202 = vunpack.c.l.b16 %v1151
        %v1203 = vunpack.c.h.b16 %v1151
        %v1204 = vunpack.c.l.b16 %v1152
        %v1205 = vunpack.c.h.b16 %v1152
        %v1206 = vunpack.c.l.b16 %v1153
        %v1207 = vunpack.c.h.b16 %v1153
        %v1208 = vunpack.c.l.b16 %v1154
        %v1209 = vunpack.c.h.b16 %v1154
        %v1210 = vunpack.c.l.b16 %v1155
        %v1211 = vunpack.c.h.b16 %v1155
        %v1212 = vunpack.c.l.b16 %v1156
        %v1213 = vunpack.c.h.b16 %v1156
        %v1214 = vunpack.c.l.b16 %v1157
        %v1215 = vunpack.c.h.b16 %v1157
        %v1216 = vunpack.c.l.b16 %v1158
        %v1217 = vunpack.c.h.b16 %v1158
        %v1218 = vunpack.c.l.b16 %v1159
        %v1219 = vunpack.c.h.b16 %v1159
        %v1220 = vunpack.c.l.b16 %v1160
        %v1221 = vunpack.c.h.b16 %v1160
        %v1222 = vunpack.c.l.b16 %v1161
        %v1223 = vunpack.c.h.b16 %v1161
        %v1224 = vunpack.c.l.b16 %v1162
        %v1225 = vunpack.c.h.b16 %v1162
        %v1226 = vunpack.c.l.b16 %v1163
        %v1227 = vunpack.c.h.b16 %v1163
        %v1228 = vpack.c.b16 %v1192, %v1188
        %v1229 = vpack.c.b16 %v1193, %v1189
        %v1230 = vpack.c.b16 %v1194, %v1190
        %v1231 = vpack.c.b16 %v1195, %v1191
        %v1232 = vpack.c.b16 %v1200, %v1196
        %v1233 = vpack.c.b16 %v1201, %v1197
        %v1234 = vpack.c.b16 %v1202, %v1198
        %v1235 = vpack.c.b16 %v1203, %v1199
        %v1236 = vpack.c.b16 %v1208, %v1204
        %v1237 = vpack.c.b16 %v1209, %v1205
        %v1238 = vpack.c.b16 %v1210, %v1206
        %v1239 = vpack.c.b16 %v1211, %v1207
        %v1240 = vpack.c.b16 %v1216, %v1212
        %v1241 = vpack.c.b16 %v1217, %v1213
        %v1242 = vpack.c.b16 %v1218, %v1214
        %v1243 = vpack.c.b16 %v1219, %v1215
        %v1244 = vpack.c.b16 %v1224, %v1220
        %v1245 = vpack.c.b16 %v1225, %v1221
        %v1246 = vpack.c.b16 %v1226, %v1222
        %v1247 = vpack.c.b16 %v1227, %v1223
        %v1269 = vsel %vm413, %v1167, 0
        %1271 = vmatprep.subr.bf16.mxu0 0
        %1272 = vmatpush1.bf16.msra.mxu0 0
        %1273 = vmatprep.subr.bf16.mxu0 0
        %1274 = vmatpush1.bf16.msra.mxu0 0
        %1275 = vmatprep.subr.bf16.mxu0 0
        %1276 = vmatpush1.bf16.msra.mxu0 0
        %1277 = vmatprep.subr.bf16.mxu0 %v1245
        %1278 = vmatpush1.bf16.msra.mxu0 %v1244
        %1279 = vmatprep.subr.bf16.mxu0 %v1241
        %1280 = vmatpush1.bf16.msra.mxu0 %v1240
        %1281 = vmatprep.subr.bf16.mxu0 %v1237
        %1282 = vmatpush1.bf16.msra.mxu0 %v1236
        %1283 = vmatprep.subr.bf16.mxu0 %v1233
        %1284 = vmatpush1.bf16.msra.mxu0 %v1232
        %1285 = vmatprep.subr.bf16.mxu0 %v1229
        %1286 = vmatpush1.bf16.msra.mxu0 %v1228
        %1287 = vmatprep.subr.bf16.mxu0 0
        %1288 = vmatpush2.bf16.msra.mxu0 0
        %1289 = vmatprep.subr.bf16.mxu0 0
        %1290 = vmatpush2.bf16.msra.mxu0 0
        %1291 = vmatprep.subr.bf16.mxu0 0
        %1292 = vmatpush2.bf16.msra.mxu0 0
        %1293 = vmatprep.subr.bf16.mxu0 0
        %1294 = vmatpush2.bf16.msra.mxu0 0
        %1295 = vmatprep.subr.bf16.mxu0 0
        %1296 = vmatpush2.bf16.msra.mxu0 0
        %1297 = vmatprep.subr.bf16.mxu0 0
        %1298 = vmatpush2.bf16.msra.mxu0 0
        %1299 = vmatprep.subr.bf16.mxu0 0
        %1300 = vmatpush2.bf16.msra.mxu0 0
        %1301 = vmatprep.subr.bf16.mxu0 0
        %1302 = vmatpush2.bf16.msra.mxu0 0
        %1303 = vmatprep.mubr.bf16.mxu0 0
        %1304 = vmatmul.mubr.bf16.gmra.mxu0 %v1269
        %v1305 = vpop.f32.mrf.mxu0
        %v1306 = vadd.f32 0.0, %v1305
        %v1307 = vpop.f32.mrf.mxu0
        %v1308 = vadd.f32 0.0, %v1307
        %v1309 = vpop.f32.mrf.mxu0
        %v1310 = vadd.f32 0.0, %v1309
        %v1311 = vpop.f32.mrf.mxu0
        %v1312 = vadd.f32 0.0, %v1311
        %1313 = vdwg.mxu0
        %1314 = vmatprep.subr.bf16.mxu0 0
        %1315 = vmatpush1.bf16.msra.mxu0 0
        %1316 = vmatprep.subr.bf16.mxu0 0
        %1317 = vmatpush1.bf16.msra.mxu0 0
        %1318 = vmatprep.subr.bf16.mxu0 0
        %1319 = vmatpush1.bf16.msra.mxu0 0
        %1320 = vmatprep.subr.bf16.mxu0 %v1247
        %1321 = vmatpush1.bf16.msra.mxu0 %v1246
        %1322 = vmatprep.subr.bf16.mxu0 %v1243
        %1323 = vmatpush1.bf16.msra.mxu0 %v1242
        %1324 = vmatprep.subr.bf16.mxu0 %v1239
        %1325 = vmatpush1.bf16.msra.mxu0 %v1238
        %1326 = vmatprep.subr.bf16.mxu0 %v1235
        %1327 = vmatpush1.bf16.msra.mxu0 %v1234
        %1328 = vmatprep.subr.bf16.mxu0 %v1231
        %1329 = vmatpush1.bf16.msra.mxu0 %v1230
        %1330 = vmatprep.subr.bf16.mxu0 0
        %1331 = vmatpush2.bf16.msra.mxu0 0
        %1332 = vmatprep.subr.bf16.mxu0 0
        %1333 = vmatpush2.bf16.msra.mxu0 0
        %1334 = vmatprep.subr.bf16.mxu0 0
        %1335 = vmatpush2.bf16.msra.mxu0 0
        %1336 = vmatprep.subr.bf16.mxu0 0
        %1337 = vmatpush2.bf16.msra.mxu0 0
        %1338 = vmatprep.subr.bf16.mxu0 0
        %1339 = vmatpush2.bf16.msra.mxu0 0
        %1340 = vmatprep.subr.bf16.mxu0 0
        %1341 = vmatpush2.bf16.msra.mxu0 0
        %1342 = vmatprep.subr.bf16.mxu0 0
        %1343 = vmatpush2.bf16.msra.mxu0 0
        %1344 = vmatprep.subr.bf16.mxu0 0
        %1345 = vmatpush2.bf16.msra.mxu0 0
        %1346 = vmatprep.mubr.bf16.mxu0 0
        %1347 = vmatmul.mubr.bf16.gmra.mxu0 %v1269
        %v1348 = vpop.f32.mrf.mxu0
        %v1349 = vadd.f32 0.0, %v1348
        %v1350 = vpop.f32.mrf.mxu0
        %v1351 = vadd.f32 0.0, %v1350
        %v1352 = vpop.f32.mrf.mxu0
        %v1353 = vadd.f32 0.0, %v1352
        %v1354 = vpop.f32.mrf.mxu0
        %v1355 = vadd.f32 0.0, %v1354
        %1356 = vdwg.mxu0
        %v1357 = vadd.f32 %v1135, %v1306
        %v1358 = vadd.f32 %v1136, %v1308
        %v1359 = vadd.f32 %v1137, %v1349
        %v1360 = vadd.f32 %v1138, %v1351
        %v1361 = vadd.f32 %v1139, %v1310
        %v1362 = vadd.f32 %v1140, %v1312
        %v1363 = vadd.f32 %v1141, %v1353
        %v1364 = vadd.f32 %v1142, %v1355
        %v1365 = vlaneseq
        %v1366 = vshrl.u32 %v1365, 7
        %v1367 = vadd.s32 %v1366, 8
        %v1368 = vadd.s32 %v1366, 16
        %v1369 = vlaneseq
        %v1370 = vand.u32 %v1369, 127
        %vm1371 = vcmp.eq.s32.totalorder %v1366, 1
        %vm1372 = vcmp.eq.s32.totalorder %v1367, 1
        %vm1373 = vcmp.eq.s32.totalorder %v1368, 1
        %vm1374 = vcmp.eq.s32.totalorder %v1366, 18
        %vm1375 = vcmp.eq.s32.totalorder %v1367, 18
        %vm1376 = vcmp.eq.s32.totalorder %v1368, 18
        %vm1377 = vmor %vm1371, %vm1374
        %vm1378 = vmor %vm1372, %vm1375
        %vm1379 = vmor %vm1373, %vm1376
        %vm1380 = vcmp.ge.s32.totalorder %v1370, 4
        %vm1381 = vcmp.lt.s32.totalorder %v1370, 8
        %vm1382 = vmand %vm1380, %vm1381
        %vm1383 = vmor %vm1377, %vm1382
        %vm1384 = vmor %vm1378, %vm1382
        %vm1385 = vmor %vm1379, %vm1382
        %vm1386 = vcmp.ge.s32.totalorder %v1370, 72
        %vm1387 = vcmp.lt.s32.totalorder %v1370, 76
        %vm1388 = vmand %vm1386, %vm1387
        %vm1389 = vmor %vm1383, %vm1388
        %vm1390 = vmor %vm1384, %vm1388
        %vm1391 = vmor %vm1385, %vm1388
        %v1392 = vsel %vm1389, -1e+30, %v254
        %v1393 = vsel %vm1390, -1e+30, %v255
        %v1394 = vsel %vm1391, -1e+30, %v256
        %1398 = vrot.lane.b32.xlu0 %v1392, 124
        %v1399 = vpop.permute.xlu0 %1398
        %1400 = vrot.lane.b32.xlu0 %v1393, 124
        %v1401 = vpop.permute.xlu0 %1400
        %1402 = vrot.lane.b32.xlu0 %v1394, 124
        %v1403 = vpop.permute.xlu0 %1402
        %v1407 = vmax.f32 %v1392, %v1399
        %v1408 = vmax.f32 %v1393, %v1401
        %v1409 = vmax.f32 %v1394, %v1403
        %1410 = vrot.lane.b32.xlu0 %v1392, 120
        %v1411 = vpop.permute.xlu0 %1410
        %1412 = vrot.lane.b32.xlu0 %v1393, 120
        %v1413 = vpop.permute.xlu0 %1412
        %1414 = vrot.lane.b32.xlu0 %v1394, 120
        %v1415 = vpop.permute.xlu0 %1414
        %v1419 = vmax.f32 %v1407, %v1411
        %v1420 = vmax.f32 %v1408, %v1413
        %v1421 = vmax.f32 %v1409, %v1415
        %vm1422 = vcmask 1046528
        %v1423 = vrot.slane %v1392, 1
        %v1424 = vrot.slane %v1393, 1
        %v1425 = vsel %vm1422, %v1423, %v1424
        %v1426 = vrot.slane %v1394, 1
        %v1427 = vsel %vm1422, %v1424, %v1426
        %v1431 = vmax.f32 %v1419, %v1425
        %v1432 = vmax.f32 %v1420, %v1427
        %v1433 = vmax.f32 %v1421, %v1426
        %1434 = vrot.lane.b32.xlu0 %v1425, 124
        %v1435 = vpop.permute.xlu0 %1434
        %1436 = vrot.lane.b32.xlu0 %v1427, 124
        %v1437 = vpop.permute.xlu0 %1436
        %1438 = vrot.lane.b32.xlu0 %v1426, 124
        %v1439 = vpop.permute.xlu0 %1438
        %v1443 = vmax.f32 %v1431, %v1435
        %v1444 = vmax.f32 %v1432, %v1437
        %v1445 = vmax.f32 %v1433, %v1439
        %1446 = vrot.lane.b32.xlu0 %v1425, 120
        %v1447 = vpop.permute.xlu0 %1446
        %1448 = vrot.lane.b32.xlu0 %v1427, 120
        %v1449 = vpop.permute.xlu0 %1448
        %1450 = vrot.lane.b32.xlu0 %v1426, 120
        %v1451 = vpop.permute.xlu0 %1450
        %v1455 = vmax.f32 %v1443, %v1447
        %v1456 = vmax.f32 %v1444, %v1449
        %v1457 = vmax.f32 %v1445, %v1451
        %vm1458 = vcmask 1045504
        %v1459 = vrot.slane %v1392, 2
        %v1460 = vrot.slane %v1393, 2
        %v1461 = vsel %vm1458, %v1459, %v1460
        %v1462 = vrot.slane %v1394, 2
        %v1463 = vsel %vm1458, %v1460, %v1462
        %v1467 = vmax.f32 %v1455, %v1461
        %v1468 = vmax.f32 %v1456, %v1463
        %v1469 = vmax.f32 %v1457, %v1462
        %1470 = vrot.lane.b32.xlu0 %v1461, 124
        %v1471 = vpop.permute.xlu0 %1470
        %1472 = vrot.lane.b32.xlu0 %v1463, 124
        %v1473 = vpop.permute.xlu0 %1472
        %1474 = vrot.lane.b32.xlu0 %v1462, 124
        %v1475 = vpop.permute.xlu0 %1474
        %v1479 = vmax.f32 %v1467, %v1471
        %v1480 = vmax.f32 %v1468, %v1473
        %v1481 = vmax.f32 %v1469, %v1475
        %1482 = vrot.lane.b32.xlu0 %v1461, 120
        %v1483 = vpop.permute.xlu0 %1482
        %1484 = vrot.lane.b32.xlu0 %v1463, 120
        %v1485 = vpop.permute.xlu0 %1484
        %1486 = vrot.lane.b32.xlu0 %v1462, 120
        %v1487 = vpop.permute.xlu0 %1486
        %v1491 = vmax.f32 %v1479, %v1483
        %v1492 = vmax.f32 %v1480, %v1485
        %v1493 = vmax.f32 %v1481, %v1487
        %v1494 = vpack.c.bf16 %v1492, %v1491
        %v1495 = vpack.c.bf16 %v1493, %v1493
        %v1496 = vld [vmem:[#allocation5] sm:$0xff]
        %v1497 = vld [vmem:[#allocation5 + $0x8] sm:$0xff]
        %v1498 = vld [vmem:[#allocation5 + $0x10] sm:$0xff]
        %v1499 = vld [vmem:[#allocation5 + $0x18] sm:$0xff]
        %v1500 = vld [vmem:[#allocation5 + $0x20] sm:$0xff]
        %v1501 = vld [vmem:[#allocation5 + $0x28] sm:$0xff]
        %v1502 = vld [vmem:[#allocation5 + $0x30] sm:$0xff]
        %v1503 = vld [vmem:[#allocation5 + $0x38] sm:$0xff]
        %v1504 = vld [vmem:[#allocation5 + $0x40] sm:$0xff]
        %v1505 = vld [vmem:[#allocation5 + $0x48] sm:$0xff]
        %v1506 = vld [vmem:[#allocation5 + $0x50] sm:$0xff]
        %v1507 = vld [vmem:[#allocation5 + $0x58] sm:$0xff]
        %v1508 = vld [vmem:[#allocation5 + $0x60] sm:$0xff]
        %v1509 = vld [vmem:[#allocation5 + $0x68] sm:$0xff]
        %v1510 = vld [vmem:[#allocation5 + $0x70] sm:$0xff]
        %v1511 = vld [vmem:[#allocation5 + $0x78] sm:$0xff]
        %v1513 = vshrl.u32 %v1494, 16
        %v1515 = vshll.u32 %v1494, 16
        %v1517 = vrot.slane %v1515, 1
        %v1518 = vor.u32 %v1513, %v1517
        %v1520 = vshll.u32 %v1495, 16
        %v1522 = vrot.slane %v1520, 1
        %v1523 = vsel %vm300, %v1518, %v1522
        %1524 = vrot.lane.b32.xlu0 %v1523, 124
        %v1525 = vpop.permute.xlu0 %1524
        %v1542 = vunpack.c.l.b16 %v1496
        %v1543 = vunpack.c.h.b16 %v1496
        %v1544 = vunpack.c.l.b16 %v1497
        %v1545 = vunpack.c.h.b16 %v1497
        %v1546 = vunpack.c.l.b16 %v1498
        %v1547 = vunpack.c.h.b16 %v1498
        %v1548 = vunpack.c.l.b16 %v1499
        %v1549 = vunpack.c.h.b16 %v1499
        %v1550 = vunpack.c.l.b16 %v1500
        %v1551 = vunpack.c.h.b16 %v1500
        %v1552 = vunpack.c.l.b16 %v1501
        %v1553 = vunpack.c.h.b16 %v1501
        %v1554 = vunpack.c.l.b16 %v1502
        %v1555 = vunpack.c.h.b16 %v1502
        %v1556 = vunpack.c.l.b16 %v1503
        %v1557 = vunpack.c.h.b16 %v1503
        %v1558 = vunpack.c.l.b16 %v1504
        %v1559 = vunpack.c.h.b16 %v1504
        %v1560 = vunpack.c.l.b16 %v1505
        %v1561 = vunpack.c.h.b16 %v1505
        %v1562 = vunpack.c.l.b16 %v1506
        %v1563 = vunpack.c.h.b16 %v1506
        %v1564 = vunpack.c.l.b16 %v1507
        %v1565 = vunpack.c.h.b16 %v1507
        %v1566 = vunpack.c.l.b16 %v1508
        %v1567 = vunpack.c.h.b16 %v1508
        %v1568 = vunpack.c.l.b16 %v1509
        %v1569 = vunpack.c.h.b16 %v1509
        %v1570 = vunpack.c.l.b16 %v1510
        %v1571 = vunpack.c.h.b16 %v1510
        %v1572 = vunpack.c.l.b16 %v1511
        %v1573 = vunpack.c.h.b16 %v1511
        %v1574 = vpack.c.b16 %v1546, %v1542
        %v1575 = vpack.c.b16 %v1547, %v1543
        %v1576 = vpack.c.b16 %v1548, %v1544
        %v1577 = vpack.c.b16 %v1549, %v1545
        %v1578 = vpack.c.b16 %v1554, %v1550
        %v1579 = vpack.c.b16 %v1555, %v1551
        %v1580 = vpack.c.b16 %v1556, %v1552
        %v1581 = vpack.c.b16 %v1557, %v1553
        %v1582 = vpack.c.b16 %v1562, %v1558
        %v1583 = vpack.c.b16 %v1563, %v1559
        %v1584 = vpack.c.b16 %v1564, %v1560
        %v1585 = vpack.c.b16 %v1565, %v1561
        %v1586 = vpack.c.b16 %v1570, %v1566
        %v1587 = vpack.c.b16 %v1571, %v1567
        %v1588 = vpack.c.b16 %v1572, %v1568
        %v1589 = vpack.c.b16 %v1573, %v1569
        %vm1606 = vcmask 523264
        %v1608 = vsel %vm1606, %v1525, 0
        %1610 = vmatprep.subr.bf16.mxu0 0
        %1611 = vmatpush1.bf16.msra.mxu0 0
        %1612 = vmatprep.subr.bf16.mxu0 0
        %1613 = vmatpush1.bf16.msra.mxu0 0
        %1614 = vmatprep.subr.bf16.mxu0 0
        %1615 = vmatpush1.bf16.msra.mxu0 0
        %1616 = vmatprep.subr.bf16.mxu0 0
        %1617 = vmatpush1.bf16.msra.mxu0 0
        %1618 = vmatprep.subr.bf16.mxu0 %v1587
        %1619 = vmatpush1.bf16.msra.mxu0 %v1586
        %1620 = vmatprep.subr.bf16.mxu0 %v1583
        %1621 = vmatpush1.bf16.msra.mxu0 %v1582
        %1622 = vmatprep.subr.bf16.mxu0 %v1579
        %1623 = vmatpush1.bf16.msra.mxu0 %v1578
        %1624 = vmatprep.subr.bf16.mxu0 %v1575
        %1625 = vmatpush1.bf16.msra.mxu0 %v1574
        %1626 = vmatprep.subr.bf16.mxu0 0
        %1627 = vmatpush2.bf16.msra.mxu0 0
        %1628 = vmatprep.subr.bf16.mxu0 0
        %1629 = vmatpush2.bf16.msra.mxu0 0
        %1630 = vmatprep.subr.bf16.mxu0 0
        %1631 = vmatpush2.bf16.msra.mxu0 0
        %1632 = vmatprep.subr.bf16.mxu0 0
        %1633 = vmatpush2.bf16.msra.mxu0 0
        %1634 = vmatprep.subr.bf16.mxu0 0
        %1635 = vmatpush2.bf16.msra.mxu0 0
        %1636 = vmatprep.subr.bf16.mxu0 0
        %1637 = vmatpush2.bf16.msra.mxu0 0
        %1638 = vmatprep.subr.bf16.mxu0 0
        %1639 = vmatpush2.bf16.msra.mxu0 0
        %1640 = vmatprep.subr.bf16.mxu0 0
        %1641 = vmatpush2.bf16.msra.mxu0 0
        %1642 = vmatprep.mubr.bf16.mxu0 0
        %1643 = vmatmul.mubr.bf16.gmra.mxu0 %v1608
        %v1644 = vpop.f32.mrf.mxu0
        %v1645 = vadd.f32 0.0, %v1644
        %v1646 = vpop.f32.mrf.mxu0
        %v1647 = vadd.f32 0.0, %v1646
        %v1648 = vpop.f32.mrf.mxu0
        %v1649 = vadd.f32 0.0, %v1648
        %v1650 = vpop.f32.mrf.mxu0
        %v1651 = vadd.f32 0.0, %v1650
        %1652 = vdwg.mxu0
        %1653 = vmatprep.subr.bf16.mxu0 0
        %1654 = vmatpush1.bf16.msra.mxu0 0
        %1655 = vmatprep.subr.bf16.mxu0 0
        %1656 = vmatpush1.bf16.msra.mxu0 0
        %1657 = vmatprep.subr.bf16.mxu0 0
        %1658 = vmatpush1.bf16.msra.mxu0 0
        %1659 = vmatprep.subr.bf16.mxu0 0
        %1660 = vmatpush1.bf16.msra.mxu0 0
        %1661 = vmatprep.subr.bf16.mxu0 %v1589
        %1662 = vmatpush1.bf16.msra.mxu0 %v1588
        %1663 = vmatprep.subr.bf16.mxu0 %v1585
        %1664 = vmatpush1.bf16.msra.mxu0 %v1584
        %1665 = vmatprep.subr.bf16.mxu0 %v1581
        %1666 = vmatpush1.bf16.msra.mxu0 %v1580
        %1667 = vmatprep.subr.bf16.mxu0 %v1577
        %1668 = vmatpush1.bf16.msra.mxu0 %v1576
        %1669 = vmatprep.subr.bf16.mxu0 0
        %1670 = vmatpush2.bf16.msra.mxu0 0
        %1671 = vmatprep.subr.bf16.mxu0 0
        %1672 = vmatpush2.bf16.msra.mxu0 0
        %1673 = vmatprep.subr.bf16.mxu0 0
        %1674 = vmatpush2.bf16.msra.mxu0 0
        %1675 = vmatprep.subr.bf16.mxu0 0
        %1676 = vmatpush2.bf16.msra.mxu0 0
        %1677 = vmatprep.subr.bf16.mxu0 0
        %1678 = vmatpush2.bf16.msra.mxu0 0
        %1679 = vmatprep.subr.bf16.mxu0 0
        %1680 = vmatpush2.bf16.msra.mxu0 0
        %1681 = vmatprep.subr.bf16.mxu0 0
        %1682 = vmatpush2.bf16.msra.mxu0 0
        %1683 = vmatprep.subr.bf16.mxu0 0
        %1684 = vmatpush2.bf16.msra.mxu0 0
        %1685 = vmatprep.mubr.bf16.mxu0 0
        %1686 = vmatmul.mubr.bf16.gmra.mxu0 %v1608
        %v1687 = vpop.f32.mrf.mxu0
        %v1688 = vadd.f32 0.0, %v1687
        %v1689 = vpop.f32.mrf.mxu0
        %v1690 = vadd.f32 0.0, %v1689
        %v1691 = vpop.f32.mrf.mxu0
        %v1692 = vadd.f32 0.0, %v1691
        %v1693 = vpop.f32.mrf.mxu0
        %v1694 = vadd.f32 0.0, %v1693
        %1695 = vdwg.mxu0
        %v1696 = vadd.f32 %v1357, %v1645
        %v1697 = vadd.f32 %v1358, %v1647
        %v1698 = vadd.f32 %v1359, %v1688
        %v1699 = vadd.f32 %v1360, %v1690
        %v1700 = vadd.f32 %v1361, %v1649
        %v1701 = vadd.f32 %v1362, %v1651
        %v1702 = vadd.f32 %v1363, %v1692
        %v1703 = vadd.f32 %v1364, %v1694
        %v1704 = vld [vmem:[%s3] sm:$0xff]
        %v1706 = vlaneseq
        %v1707 = vshrl.u32 %v1706, 7
        %v1708 = vsub.s32 0, %v1707
        %v1709 = vrot.slane %v1704, %v1708
        %v1710 = vlaneseq
        %v1711 = vshrl.u32 %v1710, 7
        %v1712 = vsub.s32 2, %v1711
        %v1713 = vrot.slane %v1704, %v1712
        %v1714 = vlaneseq
        %v1715 = vshrl.u32 %v1714, 7
        %v1716 = vsub.s32 4, %v1715
        %v1717 = vrot.slane %v1704, %v1716
        %v1718 = vlaneseq
        %v1719 = vshrl.u32 %v1718, 7
        %v1720 = vsub.s32 6, %v1719
        %v1721 = vrot.slane %v1704, %v1720
        %v1726 = vlaneseq
        %v1727 = vshrl.u32 %v1726, 7
        %v1728 = vsub.s32 0, %v1727
        %v1729 = vrot.slane %v1709, %v1728
        %v1730 = vlaneseq
        %v1731 = vshrl.u32 %v1730, 7
        %v1732 = vsub.s32 0, %v1731
        %v1733 = vrot.slane %v1713, %v1732
        %v1734 = vlaneseq
        %v1735 = vshrl.u32 %v1734, 7
        %v1736 = vsub.s32 0, %v1735
        %v1737 = vrot.slane %v1717, %v1736
        %v1738 = vlaneseq
        %v1739 = vshrl.u32 %v1738, 7
        %v1740 = vsub.s32 0, %v1739
        %v1741 = vrot.slane %v1721, %v1740
        %v1742 = vmul.f32 %v1696, %v1729
        %v1743 = vmul.f32 %v1697, %v1733
        %v1744 = vmul.f32 %v1698, %v1737
        %v1745 = vmul.f32 %v1699, %v1741
        %v1746 = vmul.f32 %v1700, %v1729
        %v1747 = vmul.f32 %v1701, %v1733
        %v1748 = vmul.f32 %v1702, %v1737
        %v1749 = vmul.f32 %v1703, %v1741
        %v1750 = vlaneseq
        %v1751 = vshrl.u32 %v1750, 7
        %v1752 = vsub.s32 1, %v1751
        %v1753 = vrot.slane %v1704, %v1752
        %v1754 = vlaneseq
        %v1755 = vshrl.u32 %v1754, 7
        %v1756 = vsub.s32 3, %v1755
        %v1757 = vrot.slane %v1704, %v1756
        %v1758 = vlaneseq
        %v1759 = vshrl.u32 %v1758, 7
        %v1760 = vsub.s32 5, %v1759
        %v1761 = vrot.slane %v1704, %v1760
        %v1762 = vlaneseq
        %v1763 = vshrl.u32 %v1762, 7
        %v1764 = vsub.s32 7, %v1763
        %v1765 = vrot.slane %v1704, %v1764
        %v1770 = vlaneseq
        %v1771 = vshrl.u32 %v1770, 7
        %v1772 = vsub.s32 1, %v1771
        %v1773 = vrot.slane %v1753, %v1772
        %v1774 = vlaneseq
        %v1775 = vshrl.u32 %v1774, 7
        %v1776 = vsub.s32 1, %v1775
        %v1777 = vrot.slane %v1757, %v1776
        %v1778 = vlaneseq
        %v1779 = vshrl.u32 %v1778, 7
        %v1780 = vsub.s32 1, %v1779
        %v1781 = vrot.slane %v1761, %v1780
        %v1782 = vlaneseq
        %v1783 = vshrl.u32 %v1782, 7
        %v1784 = vsub.s32 1, %v1783
        %v1785 = vrot.slane %v1765, %v1784
        %v1786 = vadd.f32 %v1742, %v1773
        %v1787 = vadd.f32 %v1743, %v1777
        %v1788 = vadd.f32 %v1744, %v1781
        %v1789 = vadd.f32 %v1745, %v1785
        %v1790 = vadd.f32 %v1746, %v1773
        %v1791 = vadd.f32 %v1747, %v1777
        %v1792 = vadd.f32 %v1748, %v1781
        %v1793 = vadd.f32 %v1749, %v1785
        %v1794 = vmax.f32 %v1786, 0.0
        %v1795 = vmax.f32 %v1787, 0.0
        %v1796 = vmax.f32 %v1788, 0.0
        %v1797 = vmax.f32 %v1789, 0.0
        %v1798 = vmax.f32 %v1790, 0.0
        %v1799 = vmax.f32 %v1791, 0.0
        %v1800 = vmax.f32 %v1792, 0.0
        %v1801 = vmax.f32 %v1793, 0.0
        %v1810 = vcombine.low %v1794, %v1795
        %v1811 = vcombine.high %v1794, %v1795
        %v1812 = vcombine.low %v1796, %v1797
        %v1813 = vcombine.high %v1796, %v1797
        %v1815 = vunpack.c.l.s4 1983009808
        %v1816 = vunpack.c.0.s8 %v1815
        %v1817 = vlaneseq
        %v1818 = vshrl.u32 %v1817, 7
        %v1819 = vsub.s32 %v1816, %v1818
        %v1820 = vrot.slane %v1810, %v1819
        %v1822 = vunpack.c.l.s4 1983009808
        %v1823 = vunpack.c.0.s8 %v1822
        %v1824 = vlaneseq
        %v1825 = vshrl.u32 %v1824, 7
        %v1826 = vsub.s32 %v1823, %v1825
        %v1827 = vrot.slane %v1811, %v1826
        %v1829 = vunpack.c.l.s4 1983009808
        %v1830 = vunpack.c.0.s8 %v1829
        %v1831 = vlaneseq
        %v1832 = vshrl.u32 %v1831, 7
        %v1833 = vsub.s32 %v1830, %v1832
        %v1834 = vrot.slane %v1812, %v1833
        %v1836 = vunpack.c.l.s4 1983009808
        %v1837 = vunpack.c.0.s8 %v1836
        %v1838 = vlaneseq
        %v1839 = vshrl.u32 %v1838, 7
        %v1840 = vsub.s32 %v1837, %v1839
        %v1841 = vrot.slane %v1813, %v1840
        %v1842 = vcombine.low %v1820, %v1834
        %v1843 = vcombine.high %v1820, %v1834
        %v1844 = vcombine.low %v1827, %v1841
        %v1845 = vcombine.high %v1827, %v1841
        %v1846 = vcombine.low %v1798, %v1799
        %v1847 = vcombine.high %v1798, %v1799
        %v1848 = vcombine.low %v1800, %v1801
        %v1849 = vcombine.high %v1800, %v1801
        %v1851 = vunpack.c.l.s4 1983009808
        %v1852 = vunpack.c.0.s8 %v1851
        %v1853 = vlaneseq
        %v1854 = vshrl.u32 %v1853, 7
        %v1855 = vsub.s32 %v1852, %v1854
        %v1856 = vrot.slane %v1846, %v1855
        %v1858 = vunpack.c.l.s4 1983009808
        %v1859 = vunpack.c.0.s8 %v1858
        %v1860 = vlaneseq
        %v1861 = vshrl.u32 %v1860, 7
        %v1862 = vsub.s32 %v1859, %v1861
        %v1863 = vrot.slane %v1847, %v1862
        %v1865 = vunpack.c.l.s4 1983009808
        %v1866 = vunpack.c.0.s8 %v1865
        %v1867 = vlaneseq
        %v1868 = vshrl.u32 %v1867, 7
        %v1869 = vsub.s32 %v1866, %v1868
        %v1870 = vrot.slane %v1848, %v1869
        %v1872 = vunpack.c.l.s4 1983009808
        %v1873 = vunpack.c.0.s8 %v1872
        %v1874 = vlaneseq
        %v1875 = vshrl.u32 %v1874, 7
        %v1876 = vsub.s32 %v1873, %v1875
        %v1877 = vrot.slane %v1849, %v1876
        %v1878 = vcombine.low %v1856, %v1870
        %v1879 = vcombine.high %v1856, %v1870
        %v1880 = vcombine.low %v1863, %v1877
        %v1881 = vcombine.high %v1863, %v1877
        %v1890 = vrot.slane %v1842, 7
        %v1891 = vrot.slane %v1890, 2
        %v1892 = vrot.slane %v1843, 7
        %v1893 = vrot.slane %v1892, 2
        %v1894 = vrot.slane %v1844, 7
        %v1895 = vrot.slane %v1894, 2
        %v1896 = vrot.slane %v1845, 7
        %v1897 = vrot.slane %v1896, 2
        %v1898 = vrot.slane %v1878, 7
        %v1899 = vrot.slane %v1898, 2
        %v1900 = vrot.slane %v1879, 7
        %v1901 = vrot.slane %v1900, 2
        %v1902 = vrot.slane %v1880, 7
        %v1903 = vrot.slane %v1902, 2
        %v1904 = vrot.slane %v1881, 7
        %v1905 = vrot.slane %v1904, 2
        %v1914 = vmax.f32 %v1842, %v1891
        %v1915 = vmax.f32 %v1843, %v1893
        %v1916 = vmax.f32 %v1844, %v1895
        %v1917 = vmax.f32 %v1845, %v1897
        %v1918 = vmax.f32 %v1878, %v1899
        %v1919 = vmax.f32 %v1879, %v1901
        %v1920 = vmax.f32 %v1880, %v1903
        %v1921 = vmax.f32 %v1881, %v1905
        %1930 = vrot.lane.b32.xlu0 %v1914, 96
        %v1931 = vpop.permute.xlu0 %1930
        %1932 = vrot.lane.b32.xlu0 %v1915, 96
        %v1933 = vpop.permute.xlu0 %1932
        %1934 = vrot.lane.b32.xlu0 %v1916, 96
        %v1935 = vpop.permute.xlu0 %1934
        %1936 = vrot.lane.b32.xlu0 %v1917, 96
        %v1937 = vpop.permute.xlu0 %1936
        %1938 = vrot.lane.b32.xlu0 %v1918, 96
        %v1939 = vpop.permute.xlu0 %1938
        %1940 = vrot.lane.b32.xlu0 %v1919, 96
        %v1941 = vpop.permute.xlu0 %1940
        %1942 = vrot.lane.b32.xlu0 %v1920, 96
        %v1943 = vpop.permute.xlu0 %1942
        %1944 = vrot.lane.b32.xlu0 %v1921, 96
        %v1945 = vpop.permute.xlu0 %1944
        %v1954 = vmax.f32 %v1914, %v1931
        %v1955 = vmax.f32 %v1915, %v1933
        %v1956 = vmax.f32 %v1916, %v1935
        %v1957 = vmax.f32 %v1917, %v1937
        %v1958 = vmax.f32 %v1918, %v1939
        %v1959 = vmax.f32 %v1919, %v1941
        %v1960 = vmax.f32 %v1920, %v1943
        %v1961 = vmax.f32 %v1921, %v1945
        %v1962 = vrot.slane %v1914, 2
        %v1963 = vrot.slane %v1915, 2
        %v1964 = vrot.slane %v1916, 2
        %v1965 = vrot.slane %v1917, 2
        %v1966 = vrot.slane %v1918, 2
        %v1967 = vrot.slane %v1919, 2
        %v1968 = vrot.slane %v1920, 2
        %v1969 = vrot.slane %v1921, 2
        %v1978 = vrot.slane %v1931, 2
        %v1979 = vrot.slane %v1933, 2
        %v1980 = vrot.slane %v1935, 2
        %v1981 = vrot.slane %v1937, 2
        %v1982 = vrot.slane %v1939, 2
        %v1983 = vrot.slane %v1941, 2
        %v1984 = vrot.slane %v1943, 2
        %v1985 = vrot.slane %v1945, 2
        %v1994 = vmax.f32 %v1962, %v1978
        %v1995 = vmax.f32 %v1963, %v1979
        %v1996 = vmax.f32 %v1964, %v1980
        %v1997 = vmax.f32 %v1965, %v1981
        %v1998 = vmax.f32 %v1966, %v1982
        %v1999 = vmax.f32 %v1967, %v1983
        %v2000 = vmax.f32 %v1968, %v1984
        %v2001 = vmax.f32 %v1969, %v1985
        %2002 = vrot.lane.b32.xlu0 %v1914, 64
        %v2003 = vpop.permute.xlu0 %2002
        %2004 = vrot.lane.b32.xlu0 %v1915, 64
        %v2005 = vpop.permute.xlu0 %2004
        %2006 = vrot.lane.b32.xlu0 %v1916, 64
        %v2007 = vpop.permute.xlu0 %2006
        %2008 = vrot.lane.b32.xlu0 %v1917, 64
        %v2009 = vpop.permute.xlu0 %2008
        %2010 = vrot.lane.b32.xlu0 %v1918, 64
        %v2011 = vpop.permute.xlu0 %2010
        %2012 = vrot.lane.b32.xlu0 %v1919, 64
        %v2013 = vpop.permute.xlu0 %2012
        %2014 = vrot.lane.b32.xlu0 %v1920, 64
        %v2015 = vpop.permute.xlu0 %2014
        %2016 = vrot.lane.b32.xlu0 %v1921, 64
        %v2017 = vpop.permute.xlu0 %2016
        %v2018 = vrot.slane %v2003, 2
        %v2019 = vrot.slane %v2005, 2
        %v2020 = vrot.slane %v2007, 2
        %v2021 = vrot.slane %v2009, 2
        %v2022 = vrot.slane %v2011, 2
        %v2023 = vrot.slane %v2013, 2
        %v2024 = vrot.slane %v2015, 2
        %v2025 = vrot.slane %v2017, 2
        %2034 = vrot.lane.b32.xlu0 %v1914, 32
        %v2035 = vpop.permute.xlu0 %2034
        %2036 = vrot.lane.b32.xlu0 %v1915, 32
        %v2037 = vpop.permute.xlu0 %2036
        %2038 = vrot.lane.b32.xlu0 %v1916, 32
        %v2039 = vpop.permute.xlu0 %2038
        %2040 = vrot.lane.b32.xlu0 %v1917, 32
        %v2041 = vpop.permute.xlu0 %2040
        %2042 = vrot.lane.b32.xlu0 %v1918, 32
        %v2043 = vpop.permute.xlu0 %2042
        %2044 = vrot.lane.b32.xlu0 %v1919, 32
        %v2045 = vpop.permute.xlu0 %2044
        %2046 = vrot.lane.b32.xlu0 %v1920, 32
        %v2047 = vpop.permute.xlu0 %2046
        %2048 = vrot.lane.b32.xlu0 %v1921, 32
        %v2049 = vpop.permute.xlu0 %2048
        %v2050 = vrot.slane %v2035, 2
        %v2051 = vrot.slane %v2037, 2
        %v2052 = vrot.slane %v2039, 2
        %v2053 = vrot.slane %v2041, 2
        %v2054 = vrot.slane %v2043, 2
        %v2055 = vrot.slane %v2045, 2
        %v2056 = vrot.slane %v2047, 2
        %v2057 = vrot.slane %v2049, 2
        %v2066 = vmax.f32 %v2018, %v2050
        %v2067 = vmax.f32 %v2019, %v2051
        %v2068 = vmax.f32 %v2020, %v2052
        %v2069 = vmax.f32 %v2021, %v2053
        %v2070 = vmax.f32 %v2022, %v2054
        %v2071 = vmax.f32 %v2023, %v2055
        %v2072 = vmax.f32 %v2024, %v2056
        %v2073 = vmax.f32 %v2025, %v2057
        %v2074 = vrot.slane %v1914, 4
        %v2075 = vrot.slane %v1915, 4
        %v2076 = vrot.slane %v1916, 4
        %v2077 = vrot.slane %v1917, 4
        %v2078 = vrot.slane %v1918, 4
        %v2079 = vrot.slane %v1919, 4
        %v2080 = vrot.slane %v1920, 4
        %v2081 = vrot.slane %v1921, 4
        %v2090 = vrot.slane %v1931, 4
        %v2091 = vrot.slane %v1933, 4
        %v2092 = vrot.slane %v1935, 4
        %v2093 = vrot.slane %v1937, 4
        %v2094 = vrot.slane %v1939, 4
        %v2095 = vrot.slane %v1941, 4
        %v2096 = vrot.slane %v1943, 4
        %v2097 = vrot.slane %v1945, 4
        %v2106 = vmax.f32 %v2074, %v2090
        %v2107 = vmax.f32 %v2075, %v2091
        %v2108 = vmax.f32 %v2076, %v2092
        %v2109 = vmax.f32 %v2077, %v2093
        %v2110 = vmax.f32 %v2078, %v2094
        %v2111 = vmax.f32 %v2079, %v2095
        %v2112 = vmax.f32 %v2080, %v2096
        %v2113 = vmax.f32 %v2081, %v2097
        %v2114 = vrot.slane %v2003, 4
        %v2115 = vrot.slane %v2005, 4
        %v2116 = vrot.slane %v2007, 4
        %v2117 = vrot.slane %v2009, 4
        %v2118 = vrot.slane %v2011, 4
        %v2119 = vrot.slane %v2013, 4
        %v2120 = vrot.slane %v2015, 4
        %v2121 = vrot.slane %v2017, 4
        %v2130 = vrot.slane %v2035, 4
        %v2131 = vrot.slane %v2037, 4
        %v2132 = vrot.slane %v2039, 4
        %v2133 = vrot.slane %v2041, 4
        %v2134 = vrot.slane %v2043, 4
        %v2135 = vrot.slane %v2045, 4
        %v2136 = vrot.slane %v2047, 4
        %v2137 = vrot.slane %v2049, 4
        %v2146 = vmax.f32 %v2114, %v2130
        %v2147 = vmax.f32 %v2115, %v2131
        %v2148 = vmax.f32 %v2116, %v2132
        %v2149 = vmax.f32 %v2117, %v2133
        %v2150 = vmax.f32 %v2118, %v2134
        %v2151 = vmax.f32 %v2119, %v2135
        %v2152 = vmax.f32 %v2120, %v2136
        %v2153 = vmax.f32 %v2121, %v2137
        %v2154 = vrot.slane %v1914, 6
        %v2155 = vrot.slane %v1915, 6
        %v2156 = vrot.slane %v1916, 6
        %v2157 = vrot.slane %v1917, 6
        %v2158 = vrot.slane %v1918, 6
        %v2159 = vrot.slane %v1919, 6
        %v2160 = vrot.slane %v1920, 6
        %v2161 = vrot.slane %v1921, 6
        %v2170 = vrot.slane %v1931, 6
        %v2171 = vrot.slane %v1933, 6
        %v2172 = vrot.slane %v1935, 6
        %v2173 = vrot.slane %v1937, 6
        %v2174 = vrot.slane %v1939, 6
        %v2175 = vrot.slane %v1941, 6
        %v2176 = vrot.slane %v1943, 6
        %v2177 = vrot.slane %v1945, 6
        %v2186 = vmax.f32 %v2154, %v2170
        %v2187 = vmax.f32 %v2155, %v2171
        %v2188 = vmax.f32 %v2156, %v2172
        %v2189 = vmax.f32 %v2157, %v2173
        %v2190 = vmax.f32 %v2158, %v2174
        %v2191 = vmax.f32 %v2159, %v2175
        %v2192 = vmax.f32 %v2160, %v2176
        %v2193 = vmax.f32 %v2161, %v2177
        %v2194 = vrot.slane %v2003, 6
        %v2195 = vrot.slane %v2005, 6
        %v2196 = vrot.slane %v2007, 6
        %v2197 = vrot.slane %v2009, 6
        %v2198 = vrot.slane %v2011, 6
        %v2199 = vrot.slane %v2013, 6
        %v2200 = vrot.slane %v2015, 6
        %v2201 = vrot.slane %v2017, 6
        %v2210 = vrot.slane %v2035, 6
        %v2211 = vrot.slane %v2037, 6
        %v2212 = vrot.slane %v2039, 6
        %v2213 = vrot.slane %v2041, 6
        %v2214 = vrot.slane %v2043, 6
        %v2215 = vrot.slane %v2045, 6
        %v2216 = vrot.slane %v2047, 6
        %v2217 = vrot.slane %v2049, 6
        %v2226 = vmax.f32 %v2194, %v2210
        %v2227 = vmax.f32 %v2195, %v2211
        %v2228 = vmax.f32 %v2196, %v2212
        %v2229 = vmax.f32 %v2197, %v2213
        %v2230 = vmax.f32 %v2198, %v2214
        %v2231 = vmax.f32 %v2199, %v2215
        %v2232 = vmax.f32 %v2200, %v2216
        %v2233 = vmax.f32 %v2201, %v2217
        %v2242 = vlaneseq
        %v2243 = vshrl.u32 %v2242, 7
        %v2244 = vsub.s32 0, %v2243
        %v2245 = vrot.slane %v1954, %v2244
        %v2246 = vlaneseq
        %v2247 = vshrl.u32 %v2246, 7
        %v2248 = vsub.s32 0, %v2247
        %v2249 = vrot.slane %v1955, %v2248
        %v2250 = vlaneseq
        %v2251 = vshrl.u32 %v2250, 7
        %v2252 = vsub.s32 0, %v2251
        %v2253 = vrot.slane %v1956, %v2252
        %v2254 = vlaneseq
        %v2255 = vshrl.u32 %v2254, 7
        %v2256 = vsub.s32 0, %v2255
        %v2257 = vrot.slane %v1957, %v2256
        %v2258 = vlaneseq
        %v2259 = vshrl.u32 %v2258, 7
        %v2260 = vsub.s32 0, %v2259
        %v2261 = vrot.slane %v1958, %v2260
        %v2262 = vlaneseq
        %v2263 = vshrl.u32 %v2262, 7
        %v2264 = vsub.s32 0, %v2263
        %v2265 = vrot.slane %v1959, %v2264
        %v2266 = vlaneseq
        %v2267 = vshrl.u32 %v2266, 7
        %v2268 = vsub.s32 0, %v2267
        %v2269 = vrot.slane %v1960, %v2268
        %v2270 = vlaneseq
        %v2271 = vshrl.u32 %v2270, 7
        %v2272 = vsub.s32 0, %v2271
        %v2273 = vrot.slane %v1961, %v2272
        %vm2274 = vcmask 1041409
        %v2275 = vsel %vm2274, %v2249, %v2245
        %vm2276 = vcmask 1042434
        %v2277 = vsel %vm2276, %v2253, %v2275
        %vm2278 = vcmask 1043459
        %v2279 = vsel %vm2278, %v2257, %v2277
        %vm2280 = vcmask 1044484
        %v2281 = vsel %vm2280, %v2261, %v2279
        %vm2282 = vcmask 1045509
        %v2283 = vsel %vm2282, %v2265, %v2281
        %vm2284 = vcmask 1046534
        %v2285 = vsel %vm2284, %v2269, %v2283
        %vm2286 = vcmask 1047559
        %v2287 = vsel %vm2286, %v2273, %v2285
        %2289 = vrot.lane.b32.xlu0 %v2287, 96
        %v2290 = vpop.permute.xlu0 %2289
        %v2300 = vlaneseq
        %v2301 = vshrl.u32 %v2300, 7
        %v2302 = vsub.s32 0, %v2301
        %v2303 = vrot.slane %v1994, %v2302
        %v2304 = vlaneseq
        %v2305 = vshrl.u32 %v2304, 7
        %v2306 = vsub.s32 0, %v2305
        %v2307 = vrot.slane %v1995, %v2306
        %v2308 = vlaneseq
        %v2309 = vshrl.u32 %v2308, 7
        %v2310 = vsub.s32 0, %v2309
        %v2311 = vrot.slane %v1996, %v2310
        %v2312 = vlaneseq
        %v2313 = vshrl.u32 %v2312, 7
        %v2314 = vsub.s32 0, %v2313
        %v2315 = vrot.slane %v1997, %v2314
        %v2316 = vlaneseq
        %v2317 = vshrl.u32 %v2316, 7
        %v2318 = vsub.s32 0, %v2317
        %v2319 = vrot.slane %v1998, %v2318
        %v2320 = vlaneseq
        %v2321 = vshrl.u32 %v2320, 7
        %v2322 = vsub.s32 0, %v2321
        %v2323 = vrot.slane %v1999, %v2322
        %v2324 = vlaneseq
        %v2325 = vshrl.u32 %v2324, 7
        %v2326 = vsub.s32 0, %v2325
        %v2327 = vrot.slane %v2000, %v2326
        %v2328 = vlaneseq
        %v2329 = vshrl.u32 %v2328, 7
        %v2330 = vsub.s32 0, %v2329
        %v2331 = vrot.slane %v2001, %v2330
        %v2332 = vsel %vm2274, %v2307, %v2303
        %v2333 = vsel %vm2276, %v2311, %v2332
        %v2334 = vsel %vm2278, %v2315, %v2333
        %v2335 = vsel %vm2280, %v2319, %v2334
        %v2336 = vsel %vm2282, %v2323, %v2335
        %v2337 = vsel %vm2284, %v2327, %v2336
        %v2338 = vsel %vm2286, %v2331, %v2337
        %2339 = vrot.lane.b32.xlu0 %v2338, 64
        %v2340 = vpop.permute.xlu0 %2339
        %v2350 = vlaneseq
        %v2351 = vshrl.u32 %v2350, 7
        %v2352 = vsub.s32 0, %v2351
        %v2353 = vrot.slane %v2066, %v2352
        %v2354 = vlaneseq
        %v2355 = vshrl.u32 %v2354, 7
        %v2356 = vsub.s32 0, %v2355
        %v2357 = vrot.slane %v2067, %v2356
        %v2358 = vlaneseq
        %v2359 = vshrl.u32 %v2358, 7
        %v2360 = vsub.s32 0, %v2359
        %v2361 = vrot.slane %v2068, %v2360
        %v2362 = vlaneseq
        %v2363 = vshrl.u32 %v2362, 7
        %v2364 = vsub.s32 0, %v2363
        %v2365 = vrot.slane %v2069, %v2364
        %v2366 = vlaneseq
        %v2367 = vshrl.u32 %v2366, 7
        %v2368 = vsub.s32 0, %v2367
        %v2369 = vrot.slane %v2070, %v2368
        %v2370 = vlaneseq
        %v2371 = vshrl.u32 %v2370, 7
        %v2372 = vsub.s32 0, %v2371
        %v2373 = vrot.slane %v2071, %v2372
        %v2374 = vlaneseq
        %v2375 = vshrl.u32 %v2374, 7
        %v2376 = vsub.s32 0, %v2375
        %v2377 = vrot.slane %v2072, %v2376
        %v2378 = vlaneseq
        %v2379 = vshrl.u32 %v2378, 7
        %v2380 = vsub.s32 0, %v2379
        %v2381 = vrot.slane %v2073, %v2380
        %v2382 = vsel %vm2274, %v2357, %v2353
        %v2383 = vsel %vm2276, %v2361, %v2382
        %v2384 = vsel %vm2278, %v2365, %v2383
        %v2385 = vsel %vm2280, %v2369, %v2384
        %v2386 = vsel %vm2282, %v2373, %v2385
        %v2387 = vsel %vm2284, %v2377, %v2386
        %v2388 = vsel %vm2286, %v2381, %v2387
        %2389 = vrot.lane.b32.xlu0 %v2388, 96
        %v2390 = vpop.permute.xlu0 %2389
        %v2400 = vlaneseq
        %v2401 = vshrl.u32 %v2400, 7
        %v2402 = vsub.s32 0, %v2401
        %v2403 = vrot.slane %v2106, %v2402
        %v2404 = vlaneseq
        %v2405 = vshrl.u32 %v2404, 7
        %v2406 = vsub.s32 0, %v2405
        %v2407 = vrot.slane %v2107, %v2406
        %v2408 = vlaneseq
        %v2409 = vshrl.u32 %v2408, 7
        %v2410 = vsub.s32 0, %v2409
        %v2411 = vrot.slane %v2108, %v2410
        %v2412 = vlaneseq
        %v2413 = vshrl.u32 %v2412, 7
        %v2414 = vsub.s32 0, %v2413
        %v2415 = vrot.slane %v2109, %v2414
        %v2416 = vlaneseq
        %v2417 = vshrl.u32 %v2416, 7
        %v2418 = vsub.s32 0, %v2417
        %v2419 = vrot.slane %v2110, %v2418
        %v2420 = vlaneseq
        %v2421 = vshrl.u32 %v2420, 7
        %v2422 = vsub.s32 0, %v2421
        %v2423 = vrot.slane %v2111, %v2422
        %v2424 = vlaneseq
        %v2425 = vshrl.u32 %v2424, 7
        %v2426 = vsub.s32 0, %v2425
        %v2427 = vrot.slane %v2112, %v2426
        %v2428 = vlaneseq
        %v2429 = vshrl.u32 %v2428, 7
        %v2430 = vsub.s32 0, %v2429
        %v2431 = vrot.slane %v2113, %v2430
        %v2432 = vsel %vm2274, %v2407, %v2403
        %v2433 = vsel %vm2276, %v2411, %v2432
        %v2434 = vsel %vm2278, %v2415, %v2433
        %v2435 = vsel %vm2280, %v2419, %v2434
        %v2436 = vsel %vm2282, %v2423, %v2435
        %v2437 = vsel %vm2284, %v2427, %v2436
        %v2438 = vsel %vm2286, %v2431, %v2437
        %v2448 = vlaneseq
        %v2449 = vshrl.u32 %v2448, 7
        %v2450 = vsub.s32 0, %v2449
        %v2451 = vrot.slane %v2146, %v2450
        %v2452 = vlaneseq
        %v2453 = vshrl.u32 %v2452, 7
        %v2454 = vsub.s32 0, %v2453
        %v2455 = vrot.slane %v2147, %v2454
        %v2456 = vlaneseq
        %v2457 = vshrl.u32 %v2456, 7
        %v2458 = vsub.s32 0, %v2457
        %v2459 = vrot.slane %v2148, %v2458
        %v2460 = vlaneseq
        %v2461 = vshrl.u32 %v2460, 7
        %v2462 = vsub.s32 0, %v2461
        %v2463 = vrot.slane %v2149, %v2462
        %v2464 = vlaneseq
        %v2465 = vshrl.u32 %v2464, 7
        %v2466 = vsub.s32 0, %v2465
        %v2467 = vrot.slane %v2150, %v2466
        %v2468 = vlaneseq
        %v2469 = vshrl.u32 %v2468, 7
        %v2470 = vsub.s32 0, %v2469
        %v2471 = vrot.slane %v2151, %v2470
        %v2472 = vlaneseq
        %v2473 = vshrl.u32 %v2472, 7
        %v2474 = vsub.s32 0, %v2473
        %v2475 = vrot.slane %v2152, %v2474
        %v2476 = vlaneseq
        %v2477 = vshrl.u32 %v2476, 7
        %v2478 = vsub.s32 0, %v2477
        %v2479 = vrot.slane %v2153, %v2478
        %v2480 = vsel %vm2274, %v2455, %v2451
        %v2481 = vsel %vm2276, %v2459, %v2480
        %v2482 = vsel %vm2278, %v2463, %v2481
        %v2483 = vsel %vm2280, %v2467, %v2482
        %v2484 = vsel %vm2282, %v2471, %v2483
        %v2485 = vsel %vm2284, %v2475, %v2484
        %v2486 = vsel %vm2286, %v2479, %v2485
        %2487 = vrot.lane.b32.xlu0 %v2486, 32
        %v2488 = vpop.permute.xlu0 %2487
        %v2498 = vlaneseq
        %v2499 = vshrl.u32 %v2498, 7
        %v2500 = vsub.s32 0, %v2499
        %v2501 = vrot.slane %v2186, %v2500
        %v2502 = vlaneseq
        %v2503 = vshrl.u32 %v2502, 7
        %v2504 = vsub.s32 0, %v2503
        %v2505 = vrot.slane %v2187, %v2504
        %v2506 = vlaneseq
        %v2507 = vshrl.u32 %v2506, 7
        %v2508 = vsub.s32 0, %v2507
        %v2509 = vrot.slane %v2188, %v2508
        %v2510 = vlaneseq
        %v2511 = vshrl.u32 %v2510, 7
        %v2512 = vsub.s32 0, %v2511
        %v2513 = vrot.slane %v2189, %v2512
        %v2514 = vlaneseq
        %v2515 = vshrl.u32 %v2514, 7
        %v2516 = vsub.s32 0, %v2515
        %v2517 = vrot.slane %v2190, %v2516
        %v2518 = vlaneseq
        %v2519 = vshrl.u32 %v2518, 7
        %v2520 = vsub.s32 0, %v2519
        %v2521 = vrot.slane %v2191, %v2520
        %v2522 = vlaneseq
        %v2523 = vshrl.u32 %v2522, 7
        %v2524 = vsub.s32 0, %v2523
        %v2525 = vrot.slane %v2192, %v2524
        %v2526 = vlaneseq
        %v2527 = vshrl.u32 %v2526, 7
        %v2528 = vsub.s32 0, %v2527
        %v2529 = vrot.slane %v2193, %v2528
        %v2530 = vsel %vm2274, %v2505, %v2501
        %v2531 = vsel %vm2276, %v2509, %v2530
        %v2532 = vsel %vm2278, %v2513, %v2531
        %v2533 = vsel %vm2280, %v2517, %v2532
        %v2534 = vsel %vm2282, %v2521, %v2533
        %v2535 = vsel %vm2284, %v2525, %v2534
        %v2536 = vsel %vm2286, %v2529, %v2535
        %2537 = vrot.lane.b32.xlu0 %v2536, 64
        %v2538 = vpop.permute.xlu0 %2537
        %v2548 = vlaneseq
        %v2549 = vshrl.u32 %v2548, 7
        %v2550 = vsub.s32 0, %v2549
        %v2551 = vrot.slane %v2226, %v2550
        %v2552 = vlaneseq
        %v2553 = vshrl.u32 %v2552, 7
        %v2554 = vsub.s32 0, %v2553
        %v2555 = vrot.slane %v2227, %v2554
        %v2556 = vlaneseq
        %v2557 = vshrl.u32 %v2556, 7
        %v2558 = vsub.s32 0, %v2557
        %v2559 = vrot.slane %v2228, %v2558
        %v2560 = vlaneseq
        %v2561 = vshrl.u32 %v2560, 7
        %v2562 = vsub.s32 0, %v2561
        %v2563 = vrot.slane %v2229, %v2562
        %v2564 = vlaneseq
        %v2565 = vshrl.u32 %v2564, 7
        %v2566 = vsub.s32 0, %v2565
        %v2567 = vrot.slane %v2230, %v2566
        %v2568 = vlaneseq
        %v2569 = vshrl.u32 %v2568, 7
        %v2570 = vsub.s32 0, %v2569
        %v2571 = vrot.slane %v2231, %v2570
        %v2572 = vlaneseq
        %v2573 = vshrl.u32 %v2572, 7
        %v2574 = vsub.s32 0, %v2573
        %v2575 = vrot.slane %v2232, %v2574
        %v2576 = vlaneseq
        %v2577 = vshrl.u32 %v2576, 7
        %v2578 = vsub.s32 0, %v2577
        %v2579 = vrot.slane %v2233, %v2578
        %v2580 = vsel %vm2274, %v2555, %v2551
        %v2581 = vsel %vm2276, %v2559, %v2580
        %v2582 = vsel %vm2278, %v2563, %v2581
        %v2583 = vsel %vm2280, %v2567, %v2582
        %v2584 = vsel %vm2282, %v2571, %v2583
        %v2585 = vsel %vm2284, %v2575, %v2584
        %v2586 = vsel %vm2286, %v2579, %v2585
        %2587 = vrot.lane.b32.xlu0 %v2586, 96
        %v2588 = vpop.permute.xlu0 %2587
        %vm2590 = vcmask 261120
        %v2591 = vsel %vm2590, %v2287, %v2290
        %v2592 = vsel %vm1606, %v2591, %v2340
        %vm2593 = vcmask 785408
        %v2594 = vsel %vm2593, %v2592, %v2390
        %v2595 = vsel %vm2590, %v2438, %v2488
        %v2596 = vsel %vm1606, %v2595, %v2538
        %v2597 = vsel %vm2593, %v2596, %v2588
        %v2598 = vld [vmem:[%s4] sm:$0xf]
        %v2600 = vlaneseq
        %v2601 = vshrl.u32 %v2600, 7
        %v2602 = vsub.s32 0, %v2601
        %v2603 = vrot.slane %v2598, %v2602
        %v2604 = vlaneseq
        %v2605 = vshrl.u32 %v2604, 7
        %v2606 = vsub.s32 2, %v2605
        %v2607 = vrot.slane %v2598, %v2606
        %v2610 = vlaneseq
        %v2611 = vshrl.u32 %v2610, 7
        %v2612 = vsub.s32 0, %v2611
        %v2613 = vrot.slane %v2603, %v2612
        %v2614 = vlaneseq
        %v2615 = vshrl.u32 %v2614, 7
        %v2616 = vsub.s32 0, %v2615
        %v2617 = vrot.slane %v2607, %v2616
        %v2618 = vmul.f32 %v2594, %v2613
        %v2619 = vmul.f32 %v2597, %v2617
        %v2620 = vlaneseq
        %v2621 = vshrl.u32 %v2620, 7
        %v2622 = vsub.s32 1, %v2621
        %v2623 = vrot.slane %v2598, %v2622
        %v2624 = vlaneseq
        %v2625 = vshrl.u32 %v2624, 7
        %v2626 = vsub.s32 3, %v2625
        %v2627 = vrot.slane %v2598, %v2626
        %v2630 = vlaneseq
        %v2631 = vshrl.u32 %v2630, 7
        %v2632 = vsub.s32 1, %v2631
        %v2633 = vrot.slane %v2623, %v2632
        %v2634 = vlaneseq
        %v2635 = vshrl.u32 %v2634, 7
        %v2636 = vsub.s32 1, %v2635
        %v2637 = vrot.slane %v2627, %v2636
        %v2638 = vadd.f32 %v2618, %v2633
        %v2639 = vadd.f32 %v2619, %v2637
        %2640 = vst [vmem:[%s247] sm:$0xff] %v2638
        %2641 = vst [vmem:[%s247 + $0x8] sm:$0xff] %v2639
        %s2642 = sand.u32 %s139, 1
        %s2643 = scalar_lea.sflag [#allocation4], %s2642
        %s2644 = sand.u32 %s139, 1
        %s2645 = smul.addr %s2644, 16
        %s2646 = scalar_lea.vmem [#allocation7], %s2645
        // Predicated region
        $region49: #{tpu_custom_call.1} parent=39 // pred_check
          %p2647 = pneg %p149
        $region50: #{tpu_custom_call.1} parent=39 // pred_check_branch
          %2649 = sbr.rel (%p2647) target = $region52
        $region51: #{tpu_custom_call.1} parent=39 // pred_region
          %s2651 = ssub.s32 256, 256
          %2652 = vsyncadd %s2643, %s2651
          %s2653 = smul.addr %s21, 2
          %s2654 = smul.addr %s2653, 128
          %s2655 = scalar_lea.hbm %s5, %s2654
          %s2657 = sshll.u32 %s2646, 4
          %s2658 = int_to_ptr.vmem [resolvable:$true] %s2657
          %2660 = dma.vmem_to_hbm [thread:$0]  %s2658, 256, %s2655, %s2643
        $region52: #{tpu_custom_call.1} parent=39 // pred_fallthru
          _
      $region40: #{tpu_custom_call.1} parent=5 // pred_fallthru
        _
      %p2661 = scmp.le.s32.totalorder 2, %s16
      // Predicated region
      $region53: #{tpu_custom_call.1} parent=5 // pred_check
        %p2662 = pneg %p2661
      $region54: #{tpu_custom_call.1} parent=5 // pred_check_branch
        %2664 = sbr.rel (%p2662) target = $region56
      $region55: #{tpu_custom_call.1} parent=5 // pred_region
        %s2665 = ssub.s32 %s16, 2
        // Predicated region
        $region57: #{tpu_custom_call.1} parent=55 // pred_check
          %p2666 = pneg %p155
        $region58: #{tpu_custom_call.1} parent=55 // pred_check_branch
          %2668 = sbr.rel (%p2666) target = $region60
        $region59: #{tpu_custom_call.1} parent=55 // pred_region
          %s2669 = sand.u32 %s140, 1
          %s2670 = scalar_lea.sflag [#allocation4], %s2669
          %s2671 = sand.u32 %s140, 1
          %s2672 = smul.addr %s2671, 16
          %s2673 = scalar_lea.vmem [#allocation7], %s2672
          %2674 = dma.done %s2670, 256
        $region60: #{tpu_custom_call.1} parent=55 // pred_fallthru
          _
      $region56: #{tpu_custom_call.1} parent=5 // pred_fallthru
        _
    $region6: #{tpu_custom_call.1} parent=1 // loop_footer
      %s20 = sadd.s32 1, %s16
    $region7: #{tpu_custom_call.1} parent=1 // loop_footer_branch
      %15 = sbr.rel target = $region3
    $region8: #{tpu_custom_call.1} parent=1 // loop_exit
      _
    %2675 = vsyncpa [#allocation3], 1
    %s2676 = scalar_lea.sflag [#allocation3], 1
    %2677 = vsyncpa %s2676, 1
    %2678 = vsyncpa [#allocation6], 1
    %2679 = vsyncpa [#allocation4], 1
    %s2680 = scalar_lea.sflag [#allocation4], 1
    %2681 = vsyncpa %s2680, 1

</llo_original>
